<compile_context>
chip_gen: v7x
topology: tpu7x:2x2x1
jax: 0.10.0
libtpu: 0.0.40
codegen_flags: <defaults>
</compile_context>

<pallas_src>
import functools

import jax
import jax.numpy as jnp
import numpy as np
from jax.experimental import pallas as pl
from jax.experimental.pallas import tpu as pltpu

# ---- module hyper-parameters (mirrors INNFoward.__init__ defaults) ----------
IN_FEATURES = 16          # must be even (split into two halves)
NR_LAYERS = 2             # number of coupling blocks
HIDDEN_LAYERS = 2         # hidden layers per subnet
HIDDEN_LAYERSIZE = 32
EXTRAS = 2                # w_1, w_2 conditioning features
REDUCESCALE = 0.01
SCALEEND = 1.0

HALF = IN_FEATURES // 2
NSUB = 2 * NR_LAYERS                       # two subnets per coupling block
N_STACK = max(HIDDEN_LAYERS - 1, 1)        # extra hidden layers after layer 0
SUBNET_KEYS = ("w0u", "w0w", "b0", "wh", "bh", "wo", "bo")


# -----------------------------------------------------------------------------
# Fused Pallas kernel: all coupling blocks + SCALEEND epilogue in one call.
# Weight refs are stacked over subnets: leading dim NSUB (subnet 2*blk = "a",
# subnet 2*blk+1 = "b").
# -----------------------------------------------------------------------------
def _inn_fused_kernel(x_ref, w_ref,
                      w0u_ref, w0w_ref, b0_ref, wh_ref, bh_ref, wo_ref, bo_ref,
                      out_ref):
  x = x_ref[...]              # [TB, IN_FEATURES]
  wcat = w_ref[...]           # [TB, EXTRAS]
  u1 = x[:, :HALF]
  u2 = x[:, HALF:]

  # Hoisted first-layer conditioning contribution (wcat never changes across
  # blocks): computed once per subnet, off the serial coupling chain.
  wpart = [
      jnp.dot(wcat, w0w_ref[s], preferred_element_type=jnp.float32) + b0_ref[s]
      for s in range(NSUB)
  ]

  def mlp(u, s):
    # first layer: u @ W0u + (wcat @ W0w + b0)   (split-weight form of
    # concat([u, wcat]) @ W0 + b0, with the wcat part precomputed above)
    h = jnp.tanh(
        jnp.dot(u, w0u_ref[s], preferred_element_type=jnp.float32) + wpart[s])
    for l in range(N_STACK):  # static unrolled hidden layers
      h = jnp.tanh(
          jnp.dot(h, wh_ref[s, l], preferred_element_type=jnp.float32)
          + bh_ref[s, l])
    return (jnp.dot(h, wo_ref[s], preferred_element_type=jnp.float32)
            + bo_ref[s])

  # Static unroll over coupling blocks (all weights VMEM-resident).
  for blk in range(NR_LAYERS):
    # u1 <- u1 * exp(rs*tanh(s2(u2,w))) + t2(u2,w)
    st2 = mlp(u2, 2 * blk)
    u1 = u1 * jnp.exp(REDUCESCALE * jnp.tanh(st2[:, :HALF])) + st2[:, HALF:]
    # u2 <- u2 * exp(rs*tanh(s1(u1,w))) + t1(u1,w)
    st1 = mlp(u1, 2 * blk + 1)
    u2 = u2 * jnp.exp(REDUCESCALE * jnp.tanh(st1[:, :HALF])) + st1[:, HALF:]

  out_ref[:, :HALF] = (u1 * SCALEEND).astype(out_ref.dtype)
  out_ref[:, HALF:] = (u2 * SCALEEND).astype(out_ref.dtype)


def _pick_batch_tile(B):
  # Largest 8-aligned tile that divides B (caps working set, enables batch
  # pipelining / megacore sharding when B is large).
  for tb in (1024, 512, 256, 128, 64, 32, 16, 8):
    if B % tb == 0:
      return tb
  return B  # tiny / odd batch: single full-extent block


def _inn_forward_fused(x, wcat, stacked):
  B = x.shape[0]
  TB = _pick_batch_tile(B)
  grid = (B // TB,)

  def data_spec(feat):
    return pl.BlockSpec((TB, feat), lambda i: (i, 0))

  def weight_spec(arr):
    nd = arr.ndim
    return pl.BlockSpec(arr.shape, lambda i, _nd=nd: (0,) * _nd)

  weights = [stacked[k] for k in SUBNET_KEYS]

  return pl.pallas_call(
      _inn_fused_kernel,
      grid=grid,
      in_specs=([data_spec(IN_FEATURES), data_spec(EXTRAS)]
                + [weight_spec(w) for w in weights]),
      out_specs=data_spec(IN_FEATURES),
      out_shape=jax.ShapeDtypeStruct((B, IN_FEATURES), jnp.float32),
      compiler_params=pltpu.CompilerParams(
          dimension_semantics=("parallel",)),
  )(x, wcat, *weights)


# -----------------------------------------------------------------------------
# Python wrapper: INNFoward.forward(x, w_1, w_2)
# -----------------------------------------------------------------------------
@jax.jit
def inn_forward(x, w_1, w_2, stacked_params):
  wcat = jnp.concatenate([w_1, w_2], axis=1)   # one tiny [B, EXTRAS] concat
  return _inn_forward_fused(x, wcat, stacked_params)


# -----------------------------------------------------------------------------
# Pure-JAX reference (mirrors the kernel semantics exactly)
# -----------------------------------------------------------------------------
def _mlp_ref(x, w, p):
  hi = jax.lax.Precision.HIGHEST
  h = jnp.tanh(jnp.dot(x, p["w0u"], precision=hi)
               + jnp.dot(w, p["w0w"], precision=hi) + p["b0"])
  for l in range(p["wh"].shape[0]):
    h = jnp.tanh(jnp.dot(h, p["wh"][l], precision=hi) + p["bh"][l])
  return jnp.dot(h, p["wo"], precision=hi) + p["bo"]


def inn_forward_ref(x, w_1, w_2, params):
  u1, u2 = x[:, :HALF], x[:, HALF:]
  w = jnp.concatenate([w_1, w_2], axis=1)
  for blk in params:
    st2 = _mlp_ref(u2, w, blk["net_a"])
    u1 = u1 * jnp.exp(REDUCESCALE * jnp.tanh(st2[:, :HALF])) + st2[:, HALF:]
    st1 = _mlp_ref(u1, w, blk["net_b"])
    u2 = u2 * jnp.exp(REDUCESCALE * jnp.tanh(st1[:, :HALF])) + st1[:, HALF:]
  return jnp.concatenate([u1, u2], axis=1) * SCALEEND


# -----------------------------------------------------------------------------
# Deterministic parameter initialization (synthetic; no checkpoint load)
# -----------------------------------------------------------------------------
def init_subnet(key):
  ks = jax.random.split(key, 4)
  return dict(
      w0u=0.1 * jax.random.normal(ks[0], (HALF, HIDDEN_LAYERSIZE), jnp.float32),
      w0w=0.1 * jax.random.normal(ks[1], (EXTRAS, HIDDEN_LAYERSIZE), jnp.float32),
      b0=jnp.zeros((1, HIDDEN_LAYERSIZE), jnp.float32),
      wh=0.1 * jax.random.normal(
          ks[2], (N_STACK, HIDDEN_LAYERSIZE, HIDDEN_LAYERSIZE), jnp.float32),
      bh=jnp.zeros((N_STACK, 1, HIDDEN_LAYERSIZE), jnp.float32),
      wo=0.1 * jax.random.normal(
          ks[3], (HIDDEN_LAYERSIZE, 2 * HALF), jnp.float32),
      bo=jnp.zeros((1, 2 * HALF), jnp.float32),
  )


def init_params(key):
  params = []
  for _ in range(NR_LAYERS):
    key, ka, kb = jax.random.split(key, 3)
    params.append(dict(net_a=init_subnet(ka), net_b=init_subnet(kb)))
  return params


def stack_params(params):
  """Stack per-subnet weights into 7 arrays with leading dim NSUB."""
  nets = []
  for blk in params:
    nets.append(blk["net_a"])
    nets.append(blk["net_b"])
  return {k: jnp.stack([n[k] for n in nets], axis=0) for k in SUBNET_KEYS}


# -----------------------------------------------------------------------------
if __name__ == "__main__":
  key = jax.random.PRNGKey(0)
  kx, kw1, kw2, kp = jax.random.split(key, 4)

  B = 8
  x = jax.random.normal(kx, (B, IN_FEATURES), jnp.float32)
  w_1 = jax.random.normal(kw1, (B, 1), jnp.float32)
  w_2 = jax.random.normal(kw2, (B, 1), jnp.float32)
  params = init_params(kp)
  stacked = stack_params(params)

  out = inn_forward(x, w_1, w_2, stacked)
  out = jax.block_until_ready(out)

  ref = inn_forward_ref(x, w_1, w_2, params)
  np.testing.assert_allclose(np.asarray(out), np.asarray(ref),
                             rtol=1e-3, atol=1e-3)
  assert out.shape == (B, IN_FEATURES)
  print("KERNEL_OK")
</pallas_src>

<mosaic_0001>
module attributes {stable_mosaic.version = 11 : i64} {
  func.func @_inn_fused_kernel(%arg0: i32, %arg1: memref<8x16xf32, #tpu.memory_space<vmem>>, %arg2: memref<8x2xf32, #tpu.memory_space<vmem>>, %arg3: memref<4x8x32xf32, #tpu.memory_space<vmem>>, %arg4: memref<4x2x32xf32, #tpu.memory_space<vmem>>, %arg5: memref<4x1x32xf32, #tpu.memory_space<vmem>>, %arg6: memref<4x1x32x32xf32, #tpu.memory_space<vmem>>, %arg7: memref<4x1x1x32xf32, #tpu.memory_space<vmem>>, %arg8: memref<4x32x16xf32, #tpu.memory_space<vmem>>, %arg9: memref<4x1x16xf32, #tpu.memory_space<vmem>>, %arg10: memref<8x16xf32, #tpu.memory_space<vmem>>) attributes {dimension_semantics = [#tpu.dimension_semantics<parallel>], iteration_bounds = array<i64: 1>, scalar_prefetch = 0 : i64, scratch_operands = 0 : i64, tpu.core_type = #tpu.core_type<tc>, window_params = [{transform_indices = @transform_0, window_bounds = array<i64: 8, 16>}, {transform_indices = @transform_1, window_bounds = array<i64: 8, 2>}, {pipeline_mode = #tpu.pipeline_mode<synchronous>, transform_indices = @transform_2, window_bounds = array<i64: 4, 8, 32>}, {pipeline_mode = #tpu.pipeline_mode<synchronous>, transform_indices = @transform_3, window_bounds = array<i64: 4, 2, 32>}, {pipeline_mode = #tpu.pipeline_mode<synchronous>, transform_indices = @transform_4, window_bounds = array<i64: 4, 1, 32>}, {pipeline_mode = #tpu.pipeline_mode<synchronous>, transform_indices = @transform_5, window_bounds = array<i64: 4, 1, 32, 32>}, {pipeline_mode = #tpu.pipeline_mode<synchronous>, transform_indices = @transform_6, window_bounds = array<i64: 4, 1, 1, 32>}, {pipeline_mode = #tpu.pipeline_mode<synchronous>, transform_indices = @transform_7, window_bounds = array<i64: 4, 32, 16>}, {pipeline_mode = #tpu.pipeline_mode<synchronous>, transform_indices = @transform_8, window_bounds = array<i64: 4, 1, 16>}, {transform_indices = @transform_9, window_bounds = array<i64: 8, 16>}]} {
    %c0 = arith.constant 0 : index
    %c0_0 = arith.constant 0 : index
    %0 = vector.load %arg1[%c0, %c0_0] : memref<8x16xf32, #tpu.memory_space<vmem>>, vector<8x16xf32>
    %c0_1 = arith.constant 0 : index
    %c0_2 = arith.constant 0 : index
    %1 = vector.load %arg2[%c0_1, %c0_2] : memref<8x2xf32, #tpu.memory_space<vmem>>, vector<8x2xf32>
    %2 = vector.extract_strided_slice %0 {offsets = [0, 0], sizes = [8, 8], strides = [1, 1]} : vector<8x16xf32> to vector<8x8xf32>
    %3 = vector.extract_strided_slice %0 {offsets = [0, 8], sizes = [8, 8], strides = [1, 1]} : vector<8x16xf32> to vector<8x8xf32>
    %c0_3 = arith.constant 0 : index
    %c0_4 = arith.constant 0 : index
    %c0_5 = arith.constant 0 : index
    %4 = vector.load %arg4[%c0_3, %c0_4, %c0_5] : memref<4x2x32xf32, #tpu.memory_space<vmem>>, vector<1x2x32xf32>
    %5 = vector.shape_cast %4 : vector<1x2x32xf32> to vector<2x32xf32>
    %cst = arith.constant dense<0.000000e+00> : vector<8x32xf32>
    %6 = tpu.matmul %1, %5, %cst {dimension_numbers = #tpu.dot_dimension_numbers<[1], [0], [0], [1], [0, 0, 1, 1], [], []>} : vector<8x2xf32>, vector<2x32xf32>, vector<8x32xf32> -> vector<8x32xf32>
    %c0_6 = arith.constant 0 : index
    %c0_7 = arith.constant 0 : index
    %c0_8 = arith.constant 0 : index
    %7 = vector.load %arg5[%c0_6, %c0_7, %c0_8] : memref<4x1x32xf32, #tpu.memory_space<vmem>>, vector<1x1x32xf32>
    %8 = vector.shape_cast %7 : vector<1x1x32xf32> to vector<1x32xf32>
    %9 = vector.broadcast %8 : vector<1x32xf32> to vector<8x32xf32>
    %10 = arith.addf %6, %9 : vector<8x32xf32>
    %c1 = arith.constant 1 : index
    %c0_9 = arith.constant 0 : index
    %c0_10 = arith.constant 0 : index
    %11 = vector.load %arg4[%c1, %c0_9, %c0_10] : memref<4x2x32xf32, #tpu.memory_space<vmem>>, vector<1x2x32xf32>
    %12 = vector.shape_cast %11 : vector<1x2x32xf32> to vector<2x32xf32>
    %cst_11 = arith.constant dense<0.000000e+00> : vector<8x32xf32>
    %13 = tpu.matmul %1, %12, %cst_11 {dimension_numbers = #tpu.dot_dimension_numbers<[1], [0], [0], [1], [0, 0, 1, 1], [], []>} : vector<8x2xf32>, vector<2x32xf32>, vector<8x32xf32> -> vector<8x32xf32>
    %c1_12 = arith.constant 1 : index
    %c0_13 = arith.constant 0 : index
    %c0_14 = arith.constant 0 : index
    %14 = vector.load %arg5[%c1_12, %c0_13, %c0_14] : memref<4x1x32xf32, #tpu.memory_space<vmem>>, vector<1x1x32xf32>
    %15 = vector.shape_cast %14 : vector<1x1x32xf32> to vector<1x32xf32>
    %16 = vector.broadcast %15 : vector<1x32xf32> to vector<8x32xf32>
    %17 = arith.addf %13, %16 : vector<8x32xf32>
    %c2 = arith.constant 2 : index
    %c0_15 = arith.constant 0 : index
    %c0_16 = arith.constant 0 : index
    %18 = vector.load %arg4[%c2, %c0_15, %c0_16] : memref<4x2x32xf32, #tpu.memory_space<vmem>>, vector<1x2x32xf32>
    %19 = vector.shape_cast %18 : vector<1x2x32xf32> to vector<2x32xf32>
    %cst_17 = arith.constant dense<0.000000e+00> : vector<8x32xf32>
    %20 = tpu.matmul %1, %19, %cst_17 {dimension_numbers = #tpu.dot_dimension_numbers<[1], [0], [0], [1], [0, 0, 1, 1], [], []>} : vector<8x2xf32>, vector<2x32xf32>, vector<8x32xf32> -> vector<8x32xf32>
    %c2_18 = arith.constant 2 : index
    %c0_19 = arith.constant 0 : index
    %c0_20 = arith.constant 0 : index
    %21 = vector.load %arg5[%c2_18, %c0_19, %c0_20] : memref<4x1x32xf32, #tpu.memory_space<vmem>>, vector<1x1x32xf32>
    %22 = vector.shape_cast %21 : vector<1x1x32xf32> to vector<1x32xf32>
    %23 = vector.broadcast %22 : vector<1x32xf32> to vector<8x32xf32>
    %24 = arith.addf %20, %23 : vector<8x32xf32>
    %c3 = arith.constant 3 : index
    %c0_21 = arith.constant 0 : index
    %c0_22 = arith.constant 0 : index
    %25 = vector.load %arg4[%c3, %c0_21, %c0_22] : memref<4x2x32xf32, #tpu.memory_space<vmem>>, vector<1x2x32xf32>
    %26 = vector.shape_cast %25 : vector<1x2x32xf32> to vector<2x32xf32>
    %cst_23 = arith.constant dense<0.000000e+00> : vector<8x32xf32>
    %27 = tpu.matmul %1, %26, %cst_23 {dimension_numbers = #tpu.dot_dimension_numbers<[1], [0], [0], [1], [0, 0, 1, 1], [], []>} : vector<8x2xf32>, vector<2x32xf32>, vector<8x32xf32> -> vector<8x32xf32>
    %c3_24 = arith.constant 3 : index
    %c0_25 = arith.constant 0 : index
    %c0_26 = arith.constant 0 : index
    %28 = vector.load %arg5[%c3_24, %c0_25, %c0_26] : memref<4x1x32xf32, #tpu.memory_space<vmem>>, vector<1x1x32xf32>
    %29 = vector.shape_cast %28 : vector<1x1x32xf32> to vector<1x32xf32>
    %30 = vector.broadcast %29 : vector<1x32xf32> to vector<8x32xf32>
    %31 = arith.addf %27, %30 : vector<8x32xf32>
    %c0_27 = arith.constant 0 : index
    %c0_28 = arith.constant 0 : index
    %c0_29 = arith.constant 0 : index
    %32 = vector.load %arg3[%c0_27, %c0_28, %c0_29] : memref<4x8x32xf32, #tpu.memory_space<vmem>>, vector<1x8x32xf32>
    %33 = vector.shape_cast %32 : vector<1x8x32xf32> to vector<8x32xf32>
    %cst_30 = arith.constant dense<0.000000e+00> : vector<8x32xf32>
    %34 = tpu.matmul %3, %33, %cst_30 {dimension_numbers = #tpu.dot_dimension_numbers<[1], [0], [0], [1], [0, 0, 1, 1], [], []>} : vector<8x8xf32>, vector<8x32xf32>, vector<8x32xf32> -> vector<8x32xf32>
    %35 = arith.addf %34, %10 : vector<8x32xf32>
    %36 = math.tanh %35 : vector<8x32xf32>
    %c0_31 = arith.constant 0 : index
    %c0_32 = arith.constant 0 : index
    %c0_33 = arith.constant 0 : index
    %c0_34 = arith.constant 0 : index
    %37 = vector.load %arg6[%c0_31, %c0_32, %c0_33, %c0_34] : memref<4x1x32x32xf32, #tpu.memory_space<vmem>>, vector<1x1x32x32xf32>
    %38 = vector.shape_cast %37 : vector<1x1x32x32xf32> to vector<32x32xf32>
    %cst_35 = arith.constant dense<0.000000e+00> : vector<8x32xf32>
    %39 = tpu.matmul %36, %38, %cst_35 {dimension_numbers = #tpu.dot_dimension_numbers<[1], [0], [0], [1], [0, 0, 1, 1], [], []>} : vector<8x32xf32>, vector<32x32xf32>, vector<8x32xf32> -> vector<8x32xf32>
    %c0_36 = arith.constant 0 : index
    %c0_37 = arith.constant 0 : index
    %c0_38 = arith.constant 0 : index
    %c0_39 = arith.constant 0 : index
    %40 = vector.load %arg7[%c0_36, %c0_37, %c0_38, %c0_39] : memref<4x1x1x32xf32, #tpu.memory_space<vmem>>, vector<1x1x1x32xf32>
    %41 = vector.shape_cast %40 : vector<1x1x1x32xf32> to vector<1x32xf32>
    %42 = vector.broadcast %41 : vector<1x32xf32> to vector<8x32xf32>
    %43 = arith.addf %39, %42 : vector<8x32xf32>
    %44 = math.tanh %43 : vector<8x32xf32>
    %c0_40 = arith.constant 0 : index
    %c0_41 = arith.constant 0 : index
    %c0_42 = arith.constant 0 : index
    %45 = vector.load %arg8[%c0_40, %c0_41, %c0_42] : memref<4x32x16xf32, #tpu.memory_space<vmem>>, vector<1x32x16xf32>
    %46 = vector.shape_cast %45 : vector<1x32x16xf32> to vector<32x16xf32>
    %cst_43 = arith.constant dense<0.000000e+00> : vector<8x16xf32>
    %47 = tpu.matmul %44, %46, %cst_43 {dimension_numbers = #tpu.dot_dimension_numbers<[1], [0], [0], [1], [0, 0, 1, 1], [], []>} : vector<8x32xf32>, vector<32x16xf32>, vector<8x16xf32> -> vector<8x16xf32>
    %c0_44 = arith.constant 0 : index
    %c0_45 = arith.constant 0 : index
    %c0_46 = arith.constant 0 : index
    %48 = vector.load %arg9[%c0_44, %c0_45, %c0_46] : memref<4x1x16xf32, #tpu.memory_space<vmem>>, vector<1x1x16xf32>
    %49 = vector.shape_cast %48 : vector<1x1x16xf32> to vector<1x16xf32>
    %50 = vector.broadcast %49 : vector<1x16xf32> to vector<8x16xf32>
    %51 = arith.addf %47, %50 : vector<8x16xf32>
    %52 = vector.extract_strided_slice %51 {offsets = [0, 0], sizes = [8, 8], strides = [1, 1]} : vector<8x16xf32> to vector<8x8xf32>
    %53 = math.tanh %52 : vector<8x8xf32>
    %cst_47 = arith.constant 0.00999999977 : f32
    %54 = vector.broadcast %cst_47 : f32 to vector<8x8xf32>
    %55 = arith.mulf %54, %53 : vector<8x8xf32>
    %56 = math.exp %55 : vector<8x8xf32>
    %57 = arith.mulf %2, %56 : vector<8x8xf32>
    %58 = vector.extract_strided_slice %51 {offsets = [0, 8], sizes = [8, 8], strides = [1, 1]} : vector<8x16xf32> to vector<8x8xf32>
    %59 = arith.addf %57, %58 : vector<8x8xf32>
    %c1_48 = arith.constant 1 : index
    %c0_49 = arith.constant 0 : index
    %c0_50 = arith.constant 0 : index
    %60 = vector.load %arg3[%c1_48, %c0_49, %c0_50] : memref<4x8x32xf32, #tpu.memory_space<vmem>>, vector<1x8x32xf32>
    %61 = vector.shape_cast %60 : vector<1x8x32xf32> to vector<8x32xf32>
    %cst_51 = arith.constant dense<0.000000e+00> : vector<8x32xf32>
    %62 = tpu.matmul %59, %61, %cst_51 {dimension_numbers = #tpu.dot_dimension_numbers<[1], [0], [0], [1], [0, 0, 1, 1], [], []>} : vector<8x8xf32>, vector<8x32xf32>, vector<8x32xf32> -> vector<8x32xf32>
    %63 = arith.addf %62, %17 : vector<8x32xf32>
    %64 = math.tanh %63 : vector<8x32xf32>
    %c1_52 = arith.constant 1 : index
    %c0_53 = arith.constant 0 : index
    %c0_54 = arith.constant 0 : index
    %c0_55 = arith.constant 0 : index
    %65 = vector.load %arg6[%c1_52, %c0_53, %c0_54, %c0_55] : memref<4x1x32x32xf32, #tpu.memory_space<vmem>>, vector<1x1x32x32xf32>
    %66 = vector.shape_cast %65 : vector<1x1x32x32xf32> to vector<32x32xf32>
    %cst_56 = arith.constant dense<0.000000e+00> : vector<8x32xf32>
    %67 = tpu.matmul %64, %66, %cst_56 {dimension_numbers = #tpu.dot_dimension_numbers<[1], [0], [0], [1], [0, 0, 1, 1], [], []>} : vector<8x32xf32>, vector<32x32xf32>, vector<8x32xf32> -> vector<8x32xf32>
    %c1_57 = arith.constant 1 : index
    %c0_58 = arith.constant 0 : index
    %c0_59 = arith.constant 0 : index
    %c0_60 = arith.constant 0 : index
    %68 = vector.load %arg7[%c1_57, %c0_58, %c0_59, %c0_60] : memref<4x1x1x32xf32, #tpu.memory_space<vmem>>, vector<1x1x1x32xf32>
    %69 = vector.shape_cast %68 : vector<1x1x1x32xf32> to vector<1x32xf32>
    %70 = vector.broadcast %69 : vector<1x32xf32> to vector<8x32xf32>
    %71 = arith.addf %67, %70 : vector<8x32xf32>
    %72 = math.tanh %71 : vector<8x32xf32>
    %c1_61 = arith.constant 1 : index
    %c0_62 = arith.constant 0 : index
    %c0_63 = arith.constant 0 : index
    %73 = vector.load %arg8[%c1_61, %c0_62, %c0_63] : memref<4x32x16xf32, #tpu.memory_space<vmem>>, vector<1x32x16xf32>
    %74 = vector.shape_cast %73 : vector<1x32x16xf32> to vector<32x16xf32>
    %cst_64 = arith.constant dense<0.000000e+00> : vector<8x16xf32>
    %75 = tpu.matmul %72, %74, %cst_64 {dimension_numbers = #tpu.dot_dimension_numbers<[1], [0], [0], [1], [0, 0, 1, 1], [], []>} : vector<8x32xf32>, vector<32x16xf32>, vector<8x16xf32> -> vector<8x16xf32>
    %c1_65 = arith.constant 1 : index
    %c0_66 = arith.constant 0 : index
    %c0_67 = arith.constant 0 : index
    %76 = vector.load %arg9[%c1_65, %c0_66, %c0_67] : memref<4x1x16xf32, #tpu.memory_space<vmem>>, vector<1x1x16xf32>
    %77 = vector.shape_cast %76 : vector<1x1x16xf32> to vector<1x16xf32>
    %78 = vector.broadcast %77 : vector<1x16xf32> to vector<8x16xf32>
    %79 = arith.addf %75, %78 : vector<8x16xf32>
    %80 = vector.extract_strided_slice %79 {offsets = [0, 0], sizes = [8, 8], strides = [1, 1]} : vector<8x16xf32> to vector<8x8xf32>
    %81 = math.tanh %80 : vector<8x8xf32>
    %cst_68 = arith.constant 0.00999999977 : f32
    %82 = vector.broadcast %cst_68 : f32 to vector<8x8xf32>
    %83 = arith.mulf %82, %81 : vector<8x8xf32>
    %84 = math.exp %83 : vector<8x8xf32>
    %85 = arith.mulf %3, %84 : vector<8x8xf32>
    %86 = vector.extract_strided_slice %79 {offsets = [0, 8], sizes = [8, 8], strides = [1, 1]} : vector<8x16xf32> to vector<8x8xf32>
    %87 = arith.addf %85, %86 : vector<8x8xf32>
    %c2_69 = arith.constant 2 : index
    %c0_70 = arith.constant 0 : index
    %c0_71 = arith.constant 0 : index
    %88 = vector.load %arg3[%c2_69, %c0_70, %c0_71] : memref<4x8x32xf32, #tpu.memory_space<vmem>>, vector<1x8x32xf32>
    %89 = vector.shape_cast %88 : vector<1x8x32xf32> to vector<8x32xf32>
    %cst_72 = arith.constant dense<0.000000e+00> : vector<8x32xf32>
    %90 = tpu.matmul %87, %89, %cst_72 {dimension_numbers = #tpu.dot_dimension_numbers<[1], [0], [0], [1], [0, 0, 1, 1], [], []>} : vector<8x8xf32>, vector<8x32xf32>, vector<8x32xf32> -> vector<8x32xf32>
    %91 = arith.addf %90, %24 : vector<8x32xf32>
    %92 = math.tanh %91 : vector<8x32xf32>
    %c2_73 = arith.constant 2 : index
    %c0_74 = arith.constant 0 : index
    %c0_75 = arith.constant 0 : index
    %c0_76 = arith.constant 0 : index
    %93 = vector.load %arg6[%c2_73, %c0_74, %c0_75, %c0_76] : memref<4x1x32x32xf32, #tpu.memory_space<vmem>>, vector<1x1x32x32xf32>
    %94 = vector.shape_cast %93 : vector<1x1x32x32xf32> to vector<32x32xf32>
    %cst_77 = arith.constant dense<0.000000e+00> : vector<8x32xf32>
    %95 = tpu.matmul %92, %94, %cst_77 {dimension_numbers = #tpu.dot_dimension_numbers<[1], [0], [0], [1], [0, 0, 1, 1], [], []>} : vector<8x32xf32>, vector<32x32xf32>, vector<8x32xf32> -> vector<8x32xf32>
    %c2_78 = arith.constant 2 : index
    %c0_79 = arith.constant 0 : index
    %c0_80 = arith.constant 0 : index
    %c0_81 = arith.constant 0 : index
    %96 = vector.load %arg7[%c2_78, %c0_79, %c0_80, %c0_81] : memref<4x1x1x32xf32, #tpu.memory_space<vmem>>, vector<1x1x1x32xf32>
    %97 = vector.shape_cast %96 : vector<1x1x1x32xf32> to vector<1x32xf32>
    %98 = vector.broadcast %97 : vector<1x32xf32> to vector<8x32xf32>
    %99 = arith.addf %95, %98 : vector<8x32xf32>
    %100 = math.tanh %99 : vector<8x32xf32>
    %c2_82 = arith.constant 2 : index
    %c0_83 = arith.constant 0 : index
    %c0_84 = arith.constant 0 : index
    %101 = vector.load %arg8[%c2_82, %c0_83, %c0_84] : memref<4x32x16xf32, #tpu.memory_space<vmem>>, vector<1x32x16xf32>
    %102 = vector.shape_cast %101 : vector<1x32x16xf32> to vector<32x16xf32>
    %cst_85 = arith.constant dense<0.000000e+00> : vector<8x16xf32>
    %103 = tpu.matmul %100, %102, %cst_85 {dimension_numbers = #tpu.dot_dimension_numbers<[1], [0], [0], [1], [0, 0, 1, 1], [], []>} : vector<8x32xf32>, vector<32x16xf32>, vector<8x16xf32> -> vector<8x16xf32>
    %c2_86 = arith.constant 2 : index
    %c0_87 = arith.constant 0 : index
    %c0_88 = arith.constant 0 : index
    %104 = vector.load %arg9[%c2_86, %c0_87, %c0_88] : memref<4x1x16xf32, #tpu.memory_space<vmem>>, vector<1x1x16xf32>
    %105 = vector.shape_cast %104 : vector<1x1x16xf32> to vector<1x16xf32>
    %106 = vector.broadcast %105 : vector<1x16xf32> to vector<8x16xf32>
    %107 = arith.addf %103, %106 : vector<8x16xf32>
    %108 = vector.extract_strided_slice %107 {offsets = [0, 0], sizes = [8, 8], strides = [1, 1]} : vector<8x16xf32> to vector<8x8xf32>
    %109 = math.tanh %108 : vector<8x8xf32>
    %cst_89 = arith.constant 0.00999999977 : f32
    %110 = vector.broadcast %cst_89 : f32 to vector<8x8xf32>
    %111 = arith.mulf %110, %109 : vector<8x8xf32>
    %112 = math.exp %111 : vector<8x8xf32>
    %113 = arith.mulf %59, %112 : vector<8x8xf32>
    %114 = vector.extract_strided_slice %107 {offsets = [0, 8], sizes = [8, 8], strides = [1, 1]} : vector<8x16xf32> to vector<8x8xf32>
    %115 = arith.addf %113, %114 : vector<8x8xf32>
    %c3_90 = arith.constant 3 : index
    %c0_91 = arith.constant 0 : index
    %c0_92 = arith.constant 0 : index
    %116 = vector.load %arg3[%c3_90, %c0_91, %c0_92] : memref<4x8x32xf32, #tpu.memory_space<vmem>>, vector<1x8x32xf32>
    %117 = vector.shape_cast %116 : vector<1x8x32xf32> to vector<8x32xf32>
    %cst_93 = arith.constant dense<0.000000e+00> : vector<8x32xf32>
    %118 = tpu.matmul %115, %117, %cst_93 {dimension_numbers = #tpu.dot_dimension_numbers<[1], [0], [0], [1], [0, 0, 1, 1], [], []>} : vector<8x8xf32>, vector<8x32xf32>, vector<8x32xf32> -> vector<8x32xf32>
    %119 = arith.addf %118, %31 : vector<8x32xf32>
    %120 = math.tanh %119 : vector<8x32xf32>
    %c3_94 = arith.constant 3 : index
    %c0_95 = arith.constant 0 : index
    %c0_96 = arith.constant 0 : index
    %c0_97 = arith.constant 0 : index
    %121 = vector.load %arg6[%c3_94, %c0_95, %c0_96, %c0_97] : memref<4x1x32x32xf32, #tpu.memory_space<vmem>>, vector<1x1x32x32xf32>
    %122 = vector.shape_cast %121 : vector<1x1x32x32xf32> to vector<32x32xf32>
    %cst_98 = arith.constant dense<0.000000e+00> : vector<8x32xf32>
    %123 = tpu.matmul %120, %122, %cst_98 {dimension_numbers = #tpu.dot_dimension_numbers<[1], [0], [0], [1], [0, 0, 1, 1], [], []>} : vector<8x32xf32>, vector<32x32xf32>, vector<8x32xf32> -> vector<8x32xf32>
    %c3_99 = arith.constant 3 : index
    %c0_100 = arith.constant 0 : index
    %c0_101 = arith.constant 0 : index
    %c0_102 = arith.constant 0 : index
    %124 = vector.load %arg7[%c3_99, %c0_100, %c0_101, %c0_102] : memref<4x1x1x32xf32, #tpu.memory_space<vmem>>, vector<1x1x1x32xf32>
    %125 = vector.shape_cast %124 : vector<1x1x1x32xf32> to vector<1x32xf32>
    %126 = vector.broadcast %125 : vector<1x32xf32> to vector<8x32xf32>
    %127 = arith.addf %123, %126 : vector<8x32xf32>
    %128 = math.tanh %127 : vector<8x32xf32>
    %c3_103 = arith.constant 3 : index
    %c0_104 = arith.constant 0 : index
    %c0_105 = arith.constant 0 : index
    %129 = vector.load %arg8[%c3_103, %c0_104, %c0_105] : memref<4x32x16xf32, #tpu.memory_space<vmem>>, vector<1x32x16xf32>
    %130 = vector.shape_cast %129 : vector<1x32x16xf32> to vector<32x16xf32>
    %cst_106 = arith.constant dense<0.000000e+00> : vector<8x16xf32>
    %131 = tpu.matmul %128, %130, %cst_106 {dimension_numbers = #tpu.dot_dimension_numbers<[1], [0], [0], [1], [0, 0, 1, 1], [], []>} : vector<8x32xf32>, vector<32x16xf32>, vector<8x16xf32> -> vector<8x16xf32>
    %c3_107 = arith.constant 3 : index
    %c0_108 = arith.constant 0 : index
    %c0_109 = arith.constant 0 : index
    %132 = vector.load %arg9[%c3_107, %c0_108, %c0_109] : memref<4x1x16xf32, #tpu.memory_space<vmem>>, vector<1x1x16xf32>
    %133 = vector.shape_cast %132 : vector<1x1x16xf32> to vector<1x16xf32>
    %134 = vector.broadcast %133 : vector<1x16xf32> to vector<8x16xf32>
    %135 = arith.addf %131, %134 : vector<8x16xf32>
    %136 = vector.extract_strided_slice %135 {offsets = [0, 0], sizes = [8, 8], strides = [1, 1]} : vector<8x16xf32> to vector<8x8xf32>
    %137 = math.tanh %136 : vector<8x8xf32>
    %cst_110 = arith.constant 0.00999999977 : f32
    %138 = vector.broadcast %cst_110 : f32 to vector<8x8xf32>
    %139 = arith.mulf %138, %137 : vector<8x8xf32>
    %140 = math.exp %139 : vector<8x8xf32>
    %141 = arith.mulf %87, %140 : vector<8x8xf32>
    %142 = vector.extract_strided_slice %135 {offsets = [0, 8], sizes = [8, 8], strides = [1, 1]} : vector<8x16xf32> to vector<8x8xf32>
    %143 = arith.addf %141, %142 : vector<8x8xf32>
    %cst_111 = arith.constant 1.000000e+00 : f32
    %144 = vector.broadcast %cst_111 : f32 to vector<8x8xf32>
    %145 = arith.mulf %115, %144 : vector<8x8xf32>
    %c0_112 = arith.constant 0 : index
    %c0_113 = arith.constant 0 : index
    %146 = vector.load %arg10[%c0_112, %c0_113] : memref<8x16xf32, #tpu.memory_space<vmem>>, vector<8x8xf32>
    tpu.vector_store %arg10[%c0_112, %c0_113], %145 {strides = array<i32>} : memref<8x16xf32, #tpu.memory_space<vmem>>, vector<8x8xf32>,
    %cst_114 = arith.constant 1.000000e+00 : f32
    %147 = vector.broadcast %cst_114 : f32 to vector<8x8xf32>
    %148 = arith.mulf %143, %147 : vector<8x8xf32>
    %c0_115 = arith.constant 0 : index
    %c8 = arith.constant 8 : index
    %149 = vector.load %arg10[%c0_115, %c8] : memref<8x16xf32, #tpu.memory_space<vmem>>, vector<8x8xf32>
    tpu.vector_store %arg10[%c0_115, %c8], %148 {strides = array<i32>} : memref<8x16xf32, #tpu.memory_space<vmem>>, vector<8x8xf32>,
    return
  }
  func.func @transform_0(%arg0: i32) -> (i32, i32) {
    %c0_i32 = arith.constant 0 : i32
    %c0_i32_0 = arith.constant 0 : i32
    return %arg0, %c0_i32 : i32, i32
  }
  func.func @transform_1(%arg0: i32) -> (i32, i32) {
    %c0_i32 = arith.constant 0 : i32
    %c0_i32_0 = arith.constant 0 : i32
    return %arg0, %c0_i32 : i32, i32
  }
  func.func @transform_2(%arg0: i32) -> (i32, i32, i32) {
    %c0_i32 = arith.constant 0 : i32
    %c0_i32_0 = arith.constant 0 : i32
    %c0_i32_1 = arith.constant 0 : i32
    %c0_i32_2 = arith.constant 0 : i32
    return %c0_i32, %c0_i32_0, %c0_i32_1 : i32, i32, i32
  }
  func.func @transform_3(%arg0: i32) -> (i32, i32, i32) {
    %c0_i32 = arith.constant 0 : i32
    %c0_i32_0 = arith.constant 0 : i32
    %c0_i32_1 = arith.constant 0 : i32
    %c0_i32_2 = arith.constant 0 : i32
    return %c0_i32, %c0_i32_0, %c0_i32_1 : i32, i32, i32
  }
  func.func @transform_4(%arg0: i32) -> (i32, i32, i32) {
    %c0_i32 = arith.constant 0 : i32
    %c0_i32_0 = arith.constant 0 : i32
    %c0_i32_1 = arith.constant 0 : i32
    %c0_i32_2 = arith.constant 0 : i32
    return %c0_i32, %c0_i32_0, %c0_i32_1 : i32, i32, i32
  }
  func.func @transform_5(%arg0: i32) -> (i32, i32, i32, i32) {
    %c0_i32 = arith.constant 0 : i32
    %c0_i32_0 = arith.constant 0 : i32
    %c0_i32_1 = arith.constant 0 : i32
    %c0_i32_2 = arith.constant 0 : i32
    %c0_i32_3 = arith.constant 0 : i32
    return %c0_i32, %c0_i32_0, %c0_i32_1, %c0_i32_2 : i32, i32, i32, i32
  }
  func.func @transform_6(%arg0: i32) -> (i32, i32, i32, i32) {
    %c0_i32 = arith.constant 0 : i32
    %c0_i32_0 = arith.constant 0 : i32
    %c0_i32_1 = arith.constant 0 : i32
    %c0_i32_2 = arith.constant 0 : i32
    %c0_i32_3 = arith.constant 0 : i32
    return %c0_i32, %c0_i32_0, %c0_i32_1, %c0_i32_2 : i32, i32, i32, i32
  }
  func.func @transform_7(%arg0: i32) -> (i32, i32, i32) {
    %c0_i32 = arith.constant 0 : i32
    %c0_i32_0 = arith.constant 0 : i32
    %c0_i32_1 = arith.constant 0 : i32
    %c0_i32_2 = arith.constant 0 : i32
    return %c0_i32, %c0_i32_0, %c0_i32_1 : i32, i32, i32
  }
  func.func @transform_8(%arg0: i32) -> (i32, i32, i32) {
    %c0_i32 = arith.constant 0 : i32
    %c0_i32_0 = arith.constant 0 : i32
    %c0_i32_1 = arith.constant 0 : i32
    %c0_i32_2 = arith.constant 0 : i32
    return %c0_i32, %c0_i32_0, %c0_i32_1 : i32, i32, i32
  }
  func.func @transform_9(%arg0: i32) -> (i32, i32) {
    %c0_i32 = arith.constant 0 : i32
    %c0_i32_0 = arith.constant 0 : i32
    return %arg0, %c0_i32 : i32, i32
  }
}

</mosaic_0001>

<llo_original>
// kernel: inn_forward.1
$region0: #{inn_forward.1}
  #allocation0 [shape = 'u32[]', space=smem, size = 0x4, offset = 0x4, fixed_abs, tag = 'smem constant byte address 0x4 - core index']
  #allocation1 [shape = 'u32[144,128]{1,0:T(1,128)}', space=vmem, size = 0x12000, scoped, tag = 'internal scratch']
  %s0 = inlined_call_operand.vmem [shape: f32[8,16], index: 0, kind: input, shape index: {}]
  %s1 = inlined_call_operand.vmem [shape: f32[8,2], index: 1, kind: input, shape index: {}]
  %s2 = inlined_call_operand.vmem [shape: f32[4,8,32], index: 2, kind: input, shape index: {}]
  %s3 = inlined_call_operand.vmem [shape: f32[4,2,32], index: 3, kind: input, shape index: {}]
  %s4 = inlined_call_operand.vmem [shape: f32[4,1,32], index: 4, kind: input, shape index: {}]
  %s5 = inlined_call_operand.vmem [shape: f32[4,1,32,32], index: 5, kind: input, shape index: {}]
  %s6 = inlined_call_operand.vmem [shape: f32[4,1,1,32], index: 6, kind: input, shape index: {}]
  %s7 = inlined_call_operand.vmem [shape: f32[4,32,16], index: 7, kind: input, shape index: {}]
  %s8 = inlined_call_operand.vmem [shape: f32[4,1,16], index: 8, kind: input, shape index: {}]
  %s9 = inlined_call_operand.hbm [shape: f32[8,16], index: 9, kind: output, shape index: {}]
  %s10 = sld [smem:[#allocation0]]
  $region46: #{inn_forward.1} parent=0
    _
  %s12 = ssub.s32 1, %s10
  %s13 = scalar_select 0, %s12, %s10
  $region1: #{inn_forward.1} parent=0
    #allocation2 [shape = 'u8[4096]{0}', space=vmem, size = 0x1000, scoped, tag = 'output window, operand 0, single buffered']
    #allocation3 [shape = 's32[1]{0}', space=sflag, size = 0x4, scoped, tag = 'scoped memory for inn_forward.1']
    %14 = vsyncpa [#allocation3], 0
    // Predicated region
    $region2: #{inn_forward.1} parent=1 // pred_check
      _
    $region3: #{inn_forward.1} parent=1 // pred_check_branch
      %16 = sbr.rel (0) target = $region5
    $region4: #{inn_forward.1} parent=1 // pred_region
      _
    $region5: #{inn_forward.1} parent=1 // pred_fallthru
      _
    // Predicated region
    $region6: #{inn_forward.1} parent=1 // pred_check
      _
    $region7: #{inn_forward.1} parent=1 // pred_check_branch
      %18 = sbr.rel (0) target = $region9
    $region8: #{inn_forward.1} parent=1 // pred_region
      _
    $region9: #{inn_forward.1} parent=1 // pred_fallthru
      _
    // Predicated region
    $region10: #{inn_forward.1} parent=1 // pred_check
      _
    $region11: #{inn_forward.1} parent=1 // pred_check_branch
      %20 = sbr.rel (0) target = $region13
    $region12: #{inn_forward.1} parent=1 // pred_region
      _
    $region13: #{inn_forward.1} parent=1 // pred_fallthru
      _
    // Predicated region
    $region14: #{inn_forward.1} parent=1 // pred_check
      _
    $region15: #{inn_forward.1} parent=1 // pred_check_branch
      %22 = sbr.rel (0) target = $region17
    $region16: #{inn_forward.1} parent=1 // pred_region
      _
    $region17: #{inn_forward.1} parent=1 // pred_fallthru
      _
    // Predicated region
    $region18: #{inn_forward.1} parent=1 // pred_check
      _
    $region19: #{inn_forward.1} parent=1 // pred_check_branch
      %24 = sbr.rel (0) target = $region21
    $region20: #{inn_forward.1} parent=1 // pred_region
      _
    $region21: #{inn_forward.1} parent=1 // pred_fallthru
      _
    // Predicated region
    $region22: #{inn_forward.1} parent=1 // pred_check
      _
    $region23: #{inn_forward.1} parent=1 // pred_check_branch
      %26 = sbr.rel (0) target = $region25
    $region24: #{inn_forward.1} parent=1 // pred_region
      _
    $region25: #{inn_forward.1} parent=1 // pred_fallthru
      _
    // Predicated region
    $region26: #{inn_forward.1} parent=1 // pred_check
      _
    $region27: #{inn_forward.1} parent=1 // pred_check_branch
      %28 = sbr.rel (0) target = $region29
    $region28: #{inn_forward.1} parent=1 // pred_region
      _
    $region29: #{inn_forward.1} parent=1 // pred_fallthru
      _
    // Predicated region
    $region30: #{inn_forward.1} parent=1 // pred_check
      _
    $region31: #{inn_forward.1} parent=1 // pred_check_branch
      %30 = sbr.rel (0) target = $region33
    $region32: #{inn_forward.1} parent=1 // pred_region
      _
    $region33: #{inn_forward.1} parent=1 // pred_fallthru
      _
    // Predicated region
    $region34: #{inn_forward.1} parent=1 // pred_check
      _
    $region35: #{inn_forward.1} parent=1 // pred_check_branch
      %32 = sbr.rel (0) target = $region37
    $region36: #{inn_forward.1} parent=1 // pred_region
      _
    $region37: #{inn_forward.1} parent=1 // pred_fallthru
      _
    %v33 = vld [vmem:[%s0] sm:$0xff]
    %v34 = vld [vmem:[%s1] sm:$0xff]
    %v35 = vld [vmem:[%s3] sm:$0x3]
    %v36 = vld [vmem:[%s4] sm:$0x1]
    %v38 = vlaneseq
    %v39 = vshrl.u32 %v38, 7
    %v40 = vsub.s32 0, %v39
    %v41 = vrot.slane %v36, %v40
    %vm43 = vcmask 15360
    %v45 = vsel %vm43, %v34, 0
    %vm47 = vcmask 1041408
    %v49 = vsel %vm47, %v35, 0
    %51 = vmatprep.subr.mxu0 0.0
    %52 = vmatpush1.msra.mxu0 %v49
    %53 = vmatprep.subr.mxu0 0.0
    %54 = vmatpush1.msra.mxu0 0.0
    %55 = vmatprep.subr.mxu0 0.0
    %56 = vmatpush1.msra.mxu0 0.0
    %57 = vmatprep.subr.mxu0 0.0
    %58 = vmatpush1.msra.mxu0 0.0
    %59 = vmatprep.subr.mxu0 0.0
    %60 = vmatpush1.msra.mxu0 0.0
    %61 = vmatprep.subr.mxu0 0.0
    %62 = vmatpush1.msra.mxu0 0.0
    %63 = vmatprep.subr.mxu0 0.0
    %64 = vmatpush1.msra.mxu0 0.0
    %65 = vmatprep.subr.mxu0 0.0
    %66 = vmatpush1.msra.mxu0 0.0
    %67 = vmatprep.subr.mxu0 0.0
    %68 = vmatpush1.msra.mxu0 0.0
    %69 = vmatprep.subr.mxu0 0.0
    %70 = vmatpush1.msra.mxu0 0.0
    %71 = vmatprep.subr.mxu0 0.0
    %72 = vmatpush1.msra.mxu0 0.0
    %73 = vmatprep.subr.mxu0 0.0
    %74 = vmatpush1.msra.mxu0 0.0
    %75 = vmatprep.subr.mxu0 0.0
    %76 = vmatpush1.msra.mxu0 0.0
    %77 = vmatprep.subr.mxu0 0.0
    %78 = vmatpush1.msra.mxu0 0.0
    %79 = vmatprep.subr.mxu0 0.0
    %80 = vmatpush1.msra.mxu0 0.0
    %81 = vmatprep.subr.mxu0 0.0
    %82 = vmatpush1.msra.mxu0 0.0
    %83 = vmatprep.subr.mxu0 0.0
    %84 = vmatpush1.msra.mxu0 0.0
    %85 = vmatprep.subr.mxu0 0.0
    %86 = vmatpush1.msra.mxu0 0.0
    %87 = vmatprep.subr.mxu0 0.0
    %88 = vmatpush1.msra.mxu0 0.0
    %89 = vmatprep.subr.mxu0 0.0
    %90 = vmatpush1.msra.mxu0 0.0
    %91 = vmatprep.subr.mxu0 0.0
    %92 = vmatpush1.msra.mxu0 0.0
    %93 = vmatprep.subr.mxu0 0.0
    %94 = vmatpush1.msra.mxu0 0.0
    %95 = vmatprep.subr.mxu0 0.0
    %96 = vmatpush1.msra.mxu0 0.0
    %97 = vmatprep.subr.mxu0 0.0
    %98 = vmatpush1.msra.mxu0 0.0
    %99 = vmatprep.subr.mxu0 0.0
    %100 = vmatpush1.msra.mxu0 0.0
    %101 = vmatprep.subr.mxu0 0.0
    %102 = vmatpush1.msra.mxu0 0.0
    %103 = vmatprep.subr.mxu0 0.0
    %104 = vmatpush1.msra.mxu0 0.0
    %105 = vmatprep.subr.mxu0 0.0
    %106 = vmatpush1.msra.mxu0 0.0
    %107 = vmatprep.subr.mxu0 0.0
    %108 = vmatpush1.msra.mxu0 0.0
    %109 = vmatprep.subr.mxu0 0.0
    %110 = vmatpush1.msra.mxu0 0.0
    %111 = vmatprep.subr.mxu0 0.0
    %112 = vmatpush1.msra.mxu0 0.0
    %113 = vmatprep.subr.mxu0 0.0
    %114 = vmatpush1.msra.mxu0 0.0
    %115 = vmatprep.mubr.f32.mxu0 0.0
    %116 = vmatmul.mubr.f32.gmra.mrb[0].mxu0 %v45
    %v117 = vpop.f32.mrb[0].mxu0
    %v118 = vadd.f32 %v41, %v117
    %v119 = vpop.f32.mrb[0].mxu0
    %120 = vdwg.mxu0
    %s121 = scalar_lea.vmem %s3, 2
    %v122 = vld [vmem:[%s121] sm:$0x3]
    %s123 = scalar_lea.vmem %s4, 1
    %v124 = vld [vmem:[%s123] sm:$0x1]
    %v126 = vlaneseq
    %v127 = vshrl.u32 %v126, 7
    %v128 = vsub.s32 0, %v127
    %v129 = vrot.slane %v124, %v128
    %v132 = vsel %vm47, %v122, 0
    %134 = vmatprep.subr.mxu0 0.0
    %135 = vmatpush1.msra.mxu0 %v132
    %136 = vmatprep.subr.mxu0 0.0
    %137 = vmatpush1.msra.mxu0 0.0
    %138 = vmatprep.subr.mxu0 0.0
    %139 = vmatpush1.msra.mxu0 0.0
    %140 = vmatprep.subr.mxu0 0.0
    %141 = vmatpush1.msra.mxu0 0.0
    %142 = vmatprep.subr.mxu0 0.0
    %143 = vmatpush1.msra.mxu0 0.0
    %144 = vmatprep.subr.mxu0 0.0
    %145 = vmatpush1.msra.mxu0 0.0
    %146 = vmatprep.subr.mxu0 0.0
    %147 = vmatpush1.msra.mxu0 0.0
    %148 = vmatprep.subr.mxu0 0.0
    %149 = vmatpush1.msra.mxu0 0.0
    %150 = vmatprep.subr.mxu0 0.0
    %151 = vmatpush1.msra.mxu0 0.0
    %152 = vmatprep.subr.mxu0 0.0
    %153 = vmatpush1.msra.mxu0 0.0
    %154 = vmatprep.subr.mxu0 0.0
    %155 = vmatpush1.msra.mxu0 0.0
    %156 = vmatprep.subr.mxu0 0.0
    %157 = vmatpush1.msra.mxu0 0.0
    %158 = vmatprep.subr.mxu0 0.0
    %159 = vmatpush1.msra.mxu0 0.0
    %160 = vmatprep.subr.mxu0 0.0
    %161 = vmatpush1.msra.mxu0 0.0
    %162 = vmatprep.subr.mxu0 0.0
    %163 = vmatpush1.msra.mxu0 0.0
    %164 = vmatprep.subr.mxu0 0.0
    %165 = vmatpush1.msra.mxu0 0.0
    %166 = vmatprep.subr.mxu0 0.0
    %167 = vmatpush1.msra.mxu0 0.0
    %168 = vmatprep.subr.mxu0 0.0
    %169 = vmatpush1.msra.mxu0 0.0
    %170 = vmatprep.subr.mxu0 0.0
    %171 = vmatpush1.msra.mxu0 0.0
    %172 = vmatprep.subr.mxu0 0.0
    %173 = vmatpush1.msra.mxu0 0.0
    %174 = vmatprep.subr.mxu0 0.0
    %175 = vmatpush1.msra.mxu0 0.0
    %176 = vmatprep.subr.mxu0 0.0
    %177 = vmatpush1.msra.mxu0 0.0
    %178 = vmatprep.subr.mxu0 0.0
    %179 = vmatpush1.msra.mxu0 0.0
    %180 = vmatprep.subr.mxu0 0.0
    %181 = vmatpush1.msra.mxu0 0.0
    %182 = vmatprep.subr.mxu0 0.0
    %183 = vmatpush1.msra.mxu0 0.0
    %184 = vmatprep.subr.mxu0 0.0
    %185 = vmatpush1.msra.mxu0 0.0
    %186 = vmatprep.subr.mxu0 0.0
    %187 = vmatpush1.msra.mxu0 0.0
    %188 = vmatprep.subr.mxu0 0.0
    %189 = vmatpush1.msra.mxu0 0.0
    %190 = vmatprep.subr.mxu0 0.0
    %191 = vmatpush1.msra.mxu0 0.0
    %192 = vmatprep.subr.mxu0 0.0
    %193 = vmatpush1.msra.mxu0 0.0
    %194 = vmatprep.subr.mxu0 0.0
    %195 = vmatpush1.msra.mxu0 0.0
    %196 = vmatprep.subr.mxu0 0.0
    %197 = vmatpush1.msra.mxu0 0.0
    %198 = vmatprep.mubr.f32.mxu0 0.0
    %199 = vmatmul.mubr.f32.gmra.mrb[0].mxu0 %v45
    %v200 = vpop.f32.mrb[0].mxu0
    %v201 = vadd.f32 %v129, %v200
    %v202 = vpop.f32.mrb[0].mxu0
    %203 = vdwg.mxu0
    %s204 = scalar_lea.vmem %s3, 4
    %v205 = vld [vmem:[%s204] sm:$0x3]
    %s206 = scalar_lea.vmem %s4, 2
    %v207 = vld [vmem:[%s206] sm:$0x1]
    %v209 = vlaneseq
    %v210 = vshrl.u32 %v209, 7
    %v211 = vsub.s32 0, %v210
    %v212 = vrot.slane %v207, %v211
    %v215 = vsel %vm47, %v205, 0
    %217 = vmatprep.subr.mxu0 0.0
    %218 = vmatpush1.msra.mxu0 %v215
    %219 = vmatprep.subr.mxu0 0.0
    %220 = vmatpush1.msra.mxu0 0.0
    %221 = vmatprep.subr.mxu0 0.0
    %222 = vmatpush1.msra.mxu0 0.0
    %223 = vmatprep.subr.mxu0 0.0
    %224 = vmatpush1.msra.mxu0 0.0
    %225 = vmatprep.subr.mxu0 0.0
    %226 = vmatpush1.msra.mxu0 0.0
    %227 = vmatprep.subr.mxu0 0.0
    %228 = vmatpush1.msra.mxu0 0.0
    %229 = vmatprep.subr.mxu0 0.0
    %230 = vmatpush1.msra.mxu0 0.0
    %231 = vmatprep.subr.mxu0 0.0
    %232 = vmatpush1.msra.mxu0 0.0
    %233 = vmatprep.subr.mxu0 0.0
    %234 = vmatpush1.msra.mxu0 0.0
    %235 = vmatprep.subr.mxu0 0.0
    %236 = vmatpush1.msra.mxu0 0.0
    %237 = vmatprep.subr.mxu0 0.0
    %238 = vmatpush1.msra.mxu0 0.0
    %239 = vmatprep.subr.mxu0 0.0
    %240 = vmatpush1.msra.mxu0 0.0
    %241 = vmatprep.subr.mxu0 0.0
    %242 = vmatpush1.msra.mxu0 0.0
    %243 = vmatprep.subr.mxu0 0.0
    %244 = vmatpush1.msra.mxu0 0.0
    %245 = vmatprep.subr.mxu0 0.0
    %246 = vmatpush1.msra.mxu0 0.0
    %247 = vmatprep.subr.mxu0 0.0
    %248 = vmatpush1.msra.mxu0 0.0
    %249 = vmatprep.subr.mxu0 0.0
    %250 = vmatpush1.msra.mxu0 0.0
    %251 = vmatprep.subr.mxu0 0.0
    %252 = vmatpush1.msra.mxu0 0.0
    %253 = vmatprep.subr.mxu0 0.0
    %254 = vmatpush1.msra.mxu0 0.0
    %255 = vmatprep.subr.mxu0 0.0
    %256 = vmatpush1.msra.mxu0 0.0
    %257 = vmatprep.subr.mxu0 0.0
    %258 = vmatpush1.msra.mxu0 0.0
    %259 = vmatprep.subr.mxu0 0.0
    %260 = vmatpush1.msra.mxu0 0.0
    %261 = vmatprep.subr.mxu0 0.0
    %262 = vmatpush1.msra.mxu0 0.0
    %263 = vmatprep.subr.mxu0 0.0
    %264 = vmatpush1.msra.mxu0 0.0
    %265 = vmatprep.subr.mxu0 0.0
    %266 = vmatpush1.msra.mxu0 0.0
    %267 = vmatprep.subr.mxu0 0.0
    %268 = vmatpush1.msra.mxu0 0.0
    %269 = vmatprep.subr.mxu0 0.0
    %270 = vmatpush1.msra.mxu0 0.0
    %271 = vmatprep.subr.mxu0 0.0
    %272 = vmatpush1.msra.mxu0 0.0
    %273 = vmatprep.subr.mxu0 0.0
    %274 = vmatpush1.msra.mxu0 0.0
    %275 = vmatprep.subr.mxu0 0.0
    %276 = vmatpush1.msra.mxu0 0.0
    %277 = vmatprep.subr.mxu0 0.0
    %278 = vmatpush1.msra.mxu0 0.0
    %279 = vmatprep.subr.mxu0 0.0
    %280 = vmatpush1.msra.mxu0 0.0
    %281 = vmatprep.mubr.f32.mxu0 0.0
    %282 = vmatmul.mubr.f32.gmra.mrb[0].mxu0 %v45
    %v283 = vpop.f32.mrb[0].mxu0
    %v284 = vadd.f32 %v212, %v283
    %v285 = vpop.f32.mrb[0].mxu0
    %286 = vdwg.mxu0
    %s287 = scalar_lea.vmem %s3, 6
    %v288 = vld [vmem:[%s287] sm:$0x3]
    %s289 = scalar_lea.vmem %s4, 3
    %v290 = vld [vmem:[%s289] sm:$0x1]
    %v292 = vlaneseq
    %v293 = vshrl.u32 %v292, 7
    %v294 = vsub.s32 0, %v293
    %v295 = vrot.slane %v290, %v294
    %v298 = vsel %vm47, %v288, 0
    %300 = vmatprep.subr.mxu0 0.0
    %301 = vmatpush1.msra.mxu0 %v298
    %302 = vmatprep.subr.mxu0 0.0
    %303 = vmatpush1.msra.mxu0 0.0
    %304 = vmatprep.subr.mxu0 0.0
    %305 = vmatpush1.msra.mxu0 0.0
    %306 = vmatprep.subr.mxu0 0.0
    %307 = vmatpush1.msra.mxu0 0.0
    %308 = vmatprep.subr.mxu0 0.0
    %309 = vmatpush1.msra.mxu0 0.0
    %310 = vmatprep.subr.mxu0 0.0
    %311 = vmatpush1.msra.mxu0 0.0
    %312 = vmatprep.subr.mxu0 0.0
    %313 = vmatpush1.msra.mxu0 0.0
    %314 = vmatprep.subr.mxu0 0.0
    %315 = vmatpush1.msra.mxu0 0.0
    %316 = vmatprep.subr.mxu0 0.0
    %317 = vmatpush1.msra.mxu0 0.0
    %318 = vmatprep.subr.mxu0 0.0
    %319 = vmatpush1.msra.mxu0 0.0
    %320 = vmatprep.subr.mxu0 0.0
    %321 = vmatpush1.msra.mxu0 0.0
    %322 = vmatprep.subr.mxu0 0.0
    %323 = vmatpush1.msra.mxu0 0.0
    %324 = vmatprep.subr.mxu0 0.0
    %325 = vmatpush1.msra.mxu0 0.0
    %326 = vmatprep.subr.mxu0 0.0
    %327 = vmatpush1.msra.mxu0 0.0
    %328 = vmatprep.subr.mxu0 0.0
    %329 = vmatpush1.msra.mxu0 0.0
    %330 = vmatprep.subr.mxu0 0.0
    %331 = vmatpush1.msra.mxu0 0.0
    %332 = vmatprep.subr.mxu0 0.0
    %333 = vmatpush1.msra.mxu0 0.0
    %334 = vmatprep.subr.mxu0 0.0
    %335 = vmatpush1.msra.mxu0 0.0
    %336 = vmatprep.subr.mxu0 0.0
    %337 = vmatpush1.msra.mxu0 0.0
    %338 = vmatprep.subr.mxu0 0.0
    %339 = vmatpush1.msra.mxu0 0.0
    %340 = vmatprep.subr.mxu0 0.0
    %341 = vmatpush1.msra.mxu0 0.0
    %342 = vmatprep.subr.mxu0 0.0
    %343 = vmatpush1.msra.mxu0 0.0
    %344 = vmatprep.subr.mxu0 0.0
    %345 = vmatpush1.msra.mxu0 0.0
    %346 = vmatprep.subr.mxu0 0.0
    %347 = vmatpush1.msra.mxu0 0.0
    %348 = vmatprep.subr.mxu0 0.0
    %349 = vmatpush1.msra.mxu0 0.0
    %350 = vmatprep.subr.mxu0 0.0
    %351 = vmatpush1.msra.mxu0 0.0
    %352 = vmatprep.subr.mxu0 0.0
    %353 = vmatpush1.msra.mxu0 0.0
    %354 = vmatprep.subr.mxu0 0.0
    %355 = vmatpush1.msra.mxu0 0.0
    %356 = vmatprep.subr.mxu0 0.0
    %357 = vmatpush1.msra.mxu0 0.0
    %358 = vmatprep.subr.mxu0 0.0
    %359 = vmatpush1.msra.mxu0 0.0
    %360 = vmatprep.subr.mxu0 0.0
    %361 = vmatpush1.msra.mxu0 0.0
    %362 = vmatprep.subr.mxu0 0.0
    %363 = vmatpush1.msra.mxu0 0.0
    %364 = vmatprep.mubr.f32.mxu0 0.0
    %365 = vmatmul.mubr.f32.gmra.mrb[0].mxu0 %v45
    %v366 = vpop.f32.mrb[0].mxu0
    %v367 = vadd.f32 %v295, %v366
    %v368 = vpop.f32.mrb[0].mxu0
    %369 = vdwg.mxu0
    %v370 = vld [vmem:[%s2] sm:$0xff]
    %372 = vrot.lane.b32.xlu0 %v33, 120
    %v373 = vpop.permute.xlu0 %372
    %vm374 = vcmask 64512
    %v375 = vsel %vm374, %v373, 0
    %377 = vmatprep.subr.mxu0 0.0
    %378 = vmatpush1.msra.mxu0 %v370
    %379 = vmatprep.subr.mxu0 0.0
    %380 = vmatpush1.msra.mxu0 0.0
    %381 = vmatprep.subr.mxu0 0.0
    %382 = vmatpush1.msra.mxu0 0.0
    %383 = vmatprep.subr.mxu0 0.0
    %384 = vmatpush1.msra.mxu0 0.0
    %385 = vmatprep.subr.mxu0 0.0
    %386 = vmatpush1.msra.mxu0 0.0
    %387 = vmatprep.subr.mxu0 0.0
    %388 = vmatpush1.msra.mxu0 0.0
    %389 = vmatprep.subr.mxu0 0.0
    %390 = vmatpush1.msra.mxu0 0.0
    %391 = vmatprep.subr.mxu0 0.0
    %392 = vmatpush1.msra.mxu0 0.0
    %393 = vmatprep.subr.mxu0 0.0
    %394 = vmatpush1.msra.mxu0 0.0
    %395 = vmatprep.subr.mxu0 0.0
    %396 = vmatpush1.msra.mxu0 0.0
    %397 = vmatprep.subr.mxu0 0.0
    %398 = vmatpush1.msra.mxu0 0.0
    %399 = vmatprep.subr.mxu0 0.0
    %400 = vmatpush1.msra.mxu0 0.0
    %401 = vmatprep.subr.mxu0 0.0
    %402 = vmatpush1.msra.mxu0 0.0
    %403 = vmatprep.subr.mxu0 0.0
    %404 = vmatpush1.msra.mxu0 0.0
    %405 = vmatprep.subr.mxu0 0.0
    %406 = vmatpush1.msra.mxu0 0.0
    %407 = vmatprep.subr.mxu0 0.0
    %408 = vmatpush1.msra.mxu0 0.0
    %409 = vmatprep.subr.mxu0 0.0
    %410 = vmatpush1.msra.mxu0 0.0
    %411 = vmatprep.subr.mxu0 0.0
    %412 = vmatpush1.msra.mxu0 0.0
    %413 = vmatprep.subr.mxu0 0.0
    %414 = vmatpush1.msra.mxu0 0.0
    %415 = vmatprep.subr.mxu0 0.0
    %416 = vmatpush1.msra.mxu0 0.0
    %417 = vmatprep.subr.mxu0 0.0
    %418 = vmatpush1.msra.mxu0 0.0
    %419 = vmatprep.subr.mxu0 0.0
    %420 = vmatpush1.msra.mxu0 0.0
    %421 = vmatprep.subr.mxu0 0.0
    %422 = vmatpush1.msra.mxu0 0.0
    %423 = vmatprep.subr.mxu0 0.0
    %424 = vmatpush1.msra.mxu0 0.0
    %425 = vmatprep.subr.mxu0 0.0
    %426 = vmatpush1.msra.mxu0 0.0
    %427 = vmatprep.subr.mxu0 0.0
    %428 = vmatpush1.msra.mxu0 0.0
    %429 = vmatprep.subr.mxu0 0.0
    %430 = vmatpush1.msra.mxu0 0.0
    %431 = vmatprep.subr.mxu0 0.0
    %432 = vmatpush1.msra.mxu0 0.0
    %433 = vmatprep.subr.mxu0 0.0
    %434 = vmatpush1.msra.mxu0 0.0
    %435 = vmatprep.subr.mxu0 0.0
    %436 = vmatpush1.msra.mxu0 0.0
    %437 = vmatprep.subr.mxu0 0.0
    %438 = vmatpush1.msra.mxu0 0.0
    %439 = vmatprep.subr.mxu0 0.0
    %440 = vmatpush1.msra.mxu0 0.0
    %441 = vmatprep.mubr.f32.mxu0 0.0
    %442 = vmatmul.mubr.f32.gmra.mrb[0].mxu0 %v375
    %v443 = vpop.f32.mrb[0].mxu0
    %v444 = vadd.f32 %v118, %v443
    %v445 = vpop.f32.mrb[0].mxu0
    %446 = vdwg.mxu0
    %v447 = vtanh.pop %v444
    %v448 = vld [vmem:[%s5] sm:$0xff]
    %v449 = vld [vmem:[%s5 + $0x8] sm:$0xff]
    %v450 = vld [vmem:[%s5 + $0x10] sm:$0xff]
    %v451 = vld [vmem:[%s5 + $0x18] sm:$0xff]
    %v452 = vld [vmem:[%s6] sm:$0x1]
    %v454 = vlaneseq
    %v455 = vshrl.u32 %v454, 7
    %v456 = vsub.s32 0, %v455
    %v457 = vrot.slane %v452, %v456
    %vm459 = vcmask 261120
    %v461 = vsel %vm459, %v447, 0
    %463 = vmatprep.subr.mxu0 0.0
    %464 = vmatpush1.msra.mxu0 %v448
    %465 = vmatprep.subr.mxu0 0.0
    %466 = vmatpush1.msra.mxu0 %v449
    %467 = vmatprep.subr.mxu0 0.0
    %468 = vmatpush1.msra.mxu0 %v450
    %469 = vmatprep.subr.mxu0 0.0
    %470 = vmatpush1.msra.mxu0 %v451
    %471 = vmatprep.subr.mxu0 0.0
    %472 = vmatpush1.msra.mxu0 0.0
    %473 = vmatprep.subr.mxu0 0.0
    %474 = vmatpush1.msra.mxu0 0.0
    %475 = vmatprep.subr.mxu0 0.0
    %476 = vmatpush1.msra.mxu0 0.0
    %477 = vmatprep.subr.mxu0 0.0
    %478 = vmatpush1.msra.mxu0 0.0
    %479 = vmatprep.subr.mxu0 0.0
    %480 = vmatpush1.msra.mxu0 0.0
    %481 = vmatprep.subr.mxu0 0.0
    %482 = vmatpush1.msra.mxu0 0.0
    %483 = vmatprep.subr.mxu0 0.0
    %484 = vmatpush1.msra.mxu0 0.0
    %485 = vmatprep.subr.mxu0 0.0
    %486 = vmatpush1.msra.mxu0 0.0
    %487 = vmatprep.subr.mxu0 0.0
    %488 = vmatpush1.msra.mxu0 0.0
    %489 = vmatprep.subr.mxu0 0.0
    %490 = vmatpush1.msra.mxu0 0.0
    %491 = vmatprep.subr.mxu0 0.0
    %492 = vmatpush1.msra.mxu0 0.0
    %493 = vmatprep.subr.mxu0 0.0
    %494 = vmatpush1.msra.mxu0 0.0
    %495 = vmatprep.subr.mxu0 0.0
    %496 = vmatpush1.msra.mxu0 0.0
    %497 = vmatprep.subr.mxu0 0.0
    %498 = vmatpush1.msra.mxu0 0.0
    %499 = vmatprep.subr.mxu0 0.0
    %500 = vmatpush1.msra.mxu0 0.0
    %501 = vmatprep.subr.mxu0 0.0
    %502 = vmatpush1.msra.mxu0 0.0
    %503 = vmatprep.subr.mxu0 0.0
    %504 = vmatpush1.msra.mxu0 0.0
    %505 = vmatprep.subr.mxu0 0.0
    %506 = vmatpush1.msra.mxu0 0.0
    %507 = vmatprep.subr.mxu0 0.0
    %508 = vmatpush1.msra.mxu0 0.0
    %509 = vmatprep.subr.mxu0 0.0
    %510 = vmatpush1.msra.mxu0 0.0
    %511 = vmatprep.subr.mxu0 0.0
    %512 = vmatpush1.msra.mxu0 0.0
    %513 = vmatprep.subr.mxu0 0.0
    %514 = vmatpush1.msra.mxu0 0.0
    %515 = vmatprep.subr.mxu0 0.0
    %516 = vmatpush1.msra.mxu0 0.0
    %517 = vmatprep.subr.mxu0 0.0
    %518 = vmatpush1.msra.mxu0 0.0
    %519 = vmatprep.subr.mxu0 0.0
    %520 = vmatpush1.msra.mxu0 0.0
    %521 = vmatprep.subr.mxu0 0.0
    %522 = vmatpush1.msra.mxu0 0.0
    %523 = vmatprep.subr.mxu0 0.0
    %524 = vmatpush1.msra.mxu0 0.0
    %525 = vmatprep.subr.mxu0 0.0
    %526 = vmatpush1.msra.mxu0 0.0
    %527 = vmatprep.mubr.f32.mxu0 0.0
    %528 = vmatmul.mubr.f32.gmra.mrb[0].mxu0 %v461
    %v529 = vpop.f32.mrb[0].mxu0
    %v530 = vadd.f32 %v457, %v529
    %v531 = vpop.f32.mrb[0].mxu0
    %532 = vdwg.mxu0
    %v533 = vtanh.pop %v530
    %v534 = vld [vmem:[%s7] sm:$0xff]
    %v535 = vld [vmem:[%s7 + $0x8] sm:$0xff]
    %v536 = vld [vmem:[%s7 + $0x10] sm:$0xff]
    %v537 = vld [vmem:[%s7 + $0x18] sm:$0xff]
    %v538 = vld [vmem:[%s8] sm:$0x1]
    %v540 = vlaneseq
    %v541 = vshrl.u32 %v540, 7
    %v542 = vsub.s32 0, %v541
    %v543 = vrot.slane %v538, %v542
    %v546 = vsel %vm459, %v533, 0
    %548 = vmatprep.subr.mxu0 0.0
    %549 = vmatpush1.msra.mxu0 %v534
    %550 = vmatprep.subr.mxu0 0.0
    %551 = vmatpush1.msra.mxu0 %v535
    %552 = vmatprep.subr.mxu0 0.0
    %553 = vmatpush1.msra.mxu0 %v536
    %554 = vmatprep.subr.mxu0 0.0
    %555 = vmatpush1.msra.mxu0 %v537
    %556 = vmatprep.subr.mxu0 0.0
    %557 = vmatpush1.msra.mxu0 0.0
    %558 = vmatprep.subr.mxu0 0.0
    %559 = vmatpush1.msra.mxu0 0.0
    %560 = vmatprep.subr.mxu0 0.0
    %561 = vmatpush1.msra.mxu0 0.0
    %562 = vmatprep.subr.mxu0 0.0
    %563 = vmatpush1.msra.mxu0 0.0
    %564 = vmatprep.subr.mxu0 0.0
    %565 = vmatpush1.msra.mxu0 0.0
    %566 = vmatprep.subr.mxu0 0.0
    %567 = vmatpush1.msra.mxu0 0.0
    %568 = vmatprep.subr.mxu0 0.0
    %569 = vmatpush1.msra.mxu0 0.0
    %570 = vmatprep.subr.mxu0 0.0
    %571 = vmatpush1.msra.mxu0 0.0
    %572 = vmatprep.subr.mxu0 0.0
    %573 = vmatpush1.msra.mxu0 0.0
    %574 = vmatprep.subr.mxu0 0.0
    %575 = vmatpush1.msra.mxu0 0.0
    %576 = vmatprep.subr.mxu0 0.0
    %577 = vmatpush1.msra.mxu0 0.0
    %578 = vmatprep.subr.mxu0 0.0
    %579 = vmatpush1.msra.mxu0 0.0
    %580 = vmatprep.subr.mxu0 0.0
    %581 = vmatpush1.msra.mxu0 0.0
    %582 = vmatprep.subr.mxu0 0.0
    %583 = vmatpush1.msra.mxu0 0.0
    %584 = vmatprep.subr.mxu0 0.0
    %585 = vmatpush1.msra.mxu0 0.0
    %586 = vmatprep.subr.mxu0 0.0
    %587 = vmatpush1.msra.mxu0 0.0
    %588 = vmatprep.subr.mxu0 0.0
    %589 = vmatpush1.msra.mxu0 0.0
    %590 = vmatprep.subr.mxu0 0.0
    %591 = vmatpush1.msra.mxu0 0.0
    %592 = vmatprep.subr.mxu0 0.0
    %593 = vmatpush1.msra.mxu0 0.0
    %594 = vmatprep.subr.mxu0 0.0
    %595 = vmatpush1.msra.mxu0 0.0
    %596 = vmatprep.subr.mxu0 0.0
    %597 = vmatpush1.msra.mxu0 0.0
    %598 = vmatprep.subr.mxu0 0.0
    %599 = vmatpush1.msra.mxu0 0.0
    %600 = vmatprep.subr.mxu0 0.0
    %601 = vmatpush1.msra.mxu0 0.0
    %602 = vmatprep.subr.mxu0 0.0
    %603 = vmatpush1.msra.mxu0 0.0
    %604 = vmatprep.subr.mxu0 0.0
    %605 = vmatpush1.msra.mxu0 0.0
    %606 = vmatprep.subr.mxu0 0.0
    %607 = vmatpush1.msra.mxu0 0.0
    %608 = vmatprep.subr.mxu0 0.0
    %609 = vmatpush1.msra.mxu0 0.0
    %610 = vmatprep.subr.mxu0 0.0
    %611 = vmatpush1.msra.mxu0 0.0
    %612 = vmatprep.mubr.f32.mxu0 0.0
    %613 = vmatmul.mubr.f32.gmra.mrb[0].mxu0 %v546
    %v614 = vpop.f32.mrb[0].mxu0
    %v615 = vadd.f32 %v543, %v614
    %v616 = vpop.f32.mrb[0].mxu0
    %617 = vdwg.mxu0
    %v618 = vtanh.pop %v615
    %v619 = vmul.f32 %v618, 0.01
    %v620 = vmul.f32 %v619, 1.442695
    %v621 = vpow.pop %v620
    %v622 = vmul.f32 %v33, %v621
    %624 = vrot.lane.b32.xlu0 %v615, 120
    %v625 = vpop.permute.xlu0 %624
    %v627 = vadd.f32 %v622, %v625
    %s628 = scalar_lea.vmem %s2, 8
    %v629 = vld [vmem:[%s628] sm:$0xff]
    %v631 = vsel %vm374, %v627, 0
    %633 = vmatprep.subr.mxu0 0.0
    %634 = vmatpush1.msra.mxu0 %v629
    %635 = vmatprep.subr.mxu0 0.0
    %636 = vmatpush1.msra.mxu0 0.0
    %637 = vmatprep.subr.mxu0 0.0
    %638 = vmatpush1.msra.mxu0 0.0
    %639 = vmatprep.subr.mxu0 0.0
    %640 = vmatpush1.msra.mxu0 0.0
    %641 = vmatprep.subr.mxu0 0.0
    %642 = vmatpush1.msra.mxu0 0.0
    %643 = vmatprep.subr.mxu0 0.0
    %644 = vmatpush1.msra.mxu0 0.0
    %645 = vmatprep.subr.mxu0 0.0
    %646 = vmatpush1.msra.mxu0 0.0
    %647 = vmatprep.subr.mxu0 0.0
    %648 = vmatpush1.msra.mxu0 0.0
    %649 = vmatprep.subr.mxu0 0.0
    %650 = vmatpush1.msra.mxu0 0.0
    %651 = vmatprep.subr.mxu0 0.0
    %652 = vmatpush1.msra.mxu0 0.0
    %653 = vmatprep.subr.mxu0 0.0
    %654 = vmatpush1.msra.mxu0 0.0
    %655 = vmatprep.subr.mxu0 0.0
    %656 = vmatpush1.msra.mxu0 0.0
    %657 = vmatprep.subr.mxu0 0.0
    %658 = vmatpush1.msra.mxu0 0.0
    %659 = vmatprep.subr.mxu0 0.0
    %660 = vmatpush1.msra.mxu0 0.0
    %661 = vmatprep.subr.mxu0 0.0
    %662 = vmatpush1.msra.mxu0 0.0
    %663 = vmatprep.subr.mxu0 0.0
    %664 = vmatpush1.msra.mxu0 0.0
    %665 = vmatprep.subr.mxu0 0.0
    %666 = vmatpush1.msra.mxu0 0.0
    %667 = vmatprep.subr.mxu0 0.0
    %668 = vmatpush1.msra.mxu0 0.0
    %669 = vmatprep.subr.mxu0 0.0
    %670 = vmatpush1.msra.mxu0 0.0
    %671 = vmatprep.subr.mxu0 0.0
    %672 = vmatpush1.msra.mxu0 0.0
    %673 = vmatprep.subr.mxu0 0.0
    %674 = vmatpush1.msra.mxu0 0.0
    %675 = vmatprep.subr.mxu0 0.0
    %676 = vmatpush1.msra.mxu0 0.0
    %677 = vmatprep.subr.mxu0 0.0
    %678 = vmatpush1.msra.mxu0 0.0
    %679 = vmatprep.subr.mxu0 0.0
    %680 = vmatpush1.msra.mxu0 0.0
    %681 = vmatprep.subr.mxu0 0.0
    %682 = vmatpush1.msra.mxu0 0.0
    %683 = vmatprep.subr.mxu0 0.0
    %684 = vmatpush1.msra.mxu0 0.0
    %685 = vmatprep.subr.mxu0 0.0
    %686 = vmatpush1.msra.mxu0 0.0
    %687 = vmatprep.subr.mxu0 0.0
    %688 = vmatpush1.msra.mxu0 0.0
    %689 = vmatprep.subr.mxu0 0.0
    %690 = vmatpush1.msra.mxu0 0.0
    %691 = vmatprep.subr.mxu0 0.0
    %692 = vmatpush1.msra.mxu0 0.0
    %693 = vmatprep.subr.mxu0 0.0
    %694 = vmatpush1.msra.mxu0 0.0
    %695 = vmatprep.subr.mxu0 0.0
    %696 = vmatpush1.msra.mxu0 0.0
    %697 = vmatprep.mubr.f32.mxu0 0.0
    %698 = vmatmul.mubr.f32.gmra.mrb[0].mxu0 %v631
    %v699 = vpop.f32.mrb[0].mxu0
    %v700 = vadd.f32 %v201, %v699
    %v701 = vpop.f32.mrb[0].mxu0
    %702 = vdwg.mxu0
    %v703 = vtanh.pop %v700
    %s704 = scalar_lea.vmem %s5, 32
    %v705 = vld [vmem:[%s704] sm:$0xff]
    %v706 = vld [vmem:[%s704 + $0x8] sm:$0xff]
    %v707 = vld [vmem:[%s704 + $0x10] sm:$0xff]
    %v708 = vld [vmem:[%s704 + $0x18] sm:$0xff]
    %s709 = scalar_lea.vmem %s6, 1
    %v710 = vld [vmem:[%s709] sm:$0x1]
    %v712 = vlaneseq
    %v713 = vshrl.u32 %v712, 7
    %v714 = vsub.s32 0, %v713
    %v715 = vrot.slane %v710, %v714
    %v718 = vsel %vm459, %v703, 0
    %720 = vmatprep.subr.mxu0 0.0
    %721 = vmatpush1.msra.mxu0 %v705
    %722 = vmatprep.subr.mxu0 0.0
    %723 = vmatpush1.msra.mxu0 %v706
    %724 = vmatprep.subr.mxu0 0.0
    %725 = vmatpush1.msra.mxu0 %v707
    %726 = vmatprep.subr.mxu0 0.0
    %727 = vmatpush1.msra.mxu0 %v708
    %728 = vmatprep.subr.mxu0 0.0
    %729 = vmatpush1.msra.mxu0 0.0
    %730 = vmatprep.subr.mxu0 0.0
    %731 = vmatpush1.msra.mxu0 0.0
    %732 = vmatprep.subr.mxu0 0.0
    %733 = vmatpush1.msra.mxu0 0.0
    %734 = vmatprep.subr.mxu0 0.0
    %735 = vmatpush1.msra.mxu0 0.0
    %736 = vmatprep.subr.mxu0 0.0
    %737 = vmatpush1.msra.mxu0 0.0
    %738 = vmatprep.subr.mxu0 0.0
    %739 = vmatpush1.msra.mxu0 0.0
    %740 = vmatprep.subr.mxu0 0.0
    %741 = vmatpush1.msra.mxu0 0.0
    %742 = vmatprep.subr.mxu0 0.0
    %743 = vmatpush1.msra.mxu0 0.0
    %744 = vmatprep.subr.mxu0 0.0
    %745 = vmatpush1.msra.mxu0 0.0
    %746 = vmatprep.subr.mxu0 0.0
    %747 = vmatpush1.msra.mxu0 0.0
    %748 = vmatprep.subr.mxu0 0.0
    %749 = vmatpush1.msra.mxu0 0.0
    %750 = vmatprep.subr.mxu0 0.0
    %751 = vmatpush1.msra.mxu0 0.0
    %752 = vmatprep.subr.mxu0 0.0
    %753 = vmatpush1.msra.mxu0 0.0
    %754 = vmatprep.subr.mxu0 0.0
    %755 = vmatpush1.msra.mxu0 0.0
    %756 = vmatprep.subr.mxu0 0.0
    %757 = vmatpush1.msra.mxu0 0.0
    %758 = vmatprep.subr.mxu0 0.0
    %759 = vmatpush1.msra.mxu0 0.0
    %760 = vmatprep.subr.mxu0 0.0
    %761 = vmatpush1.msra.mxu0 0.0
    %762 = vmatprep.subr.mxu0 0.0
    %763 = vmatpush1.msra.mxu0 0.0
    %764 = vmatprep.subr.mxu0 0.0
    %765 = vmatpush1.msra.mxu0 0.0
    %766 = vmatprep.subr.mxu0 0.0
    %767 = vmatpush1.msra.mxu0 0.0
    %768 = vmatprep.subr.mxu0 0.0
    %769 = vmatpush1.msra.mxu0 0.0
    %770 = vmatprep.subr.mxu0 0.0
    %771 = vmatpush1.msra.mxu0 0.0
    %772 = vmatprep.subr.mxu0 0.0
    %773 = vmatpush1.msra.mxu0 0.0
    %774 = vmatprep.subr.mxu0 0.0
    %775 = vmatpush1.msra.mxu0 0.0
    %776 = vmatprep.subr.mxu0 0.0
    %777 = vmatpush1.msra.mxu0 0.0
    %778 = vmatprep.subr.mxu0 0.0
    %779 = vmatpush1.msra.mxu0 0.0
    %780 = vmatprep.subr.mxu0 0.0
    %781 = vmatpush1.msra.mxu0 0.0
    %782 = vmatprep.subr.mxu0 0.0
    %783 = vmatpush1.msra.mxu0 0.0
    %784 = vmatprep.mubr.f32.mxu0 0.0
    %785 = vmatmul.mubr.f32.gmra.mrb[0].mxu0 %v718
    %v786 = vpop.f32.mrb[0].mxu0
    %v787 = vadd.f32 %v715, %v786
    %v788 = vpop.f32.mrb[0].mxu0
    %789 = vdwg.mxu0
    %v790 = vtanh.pop %v787
    %s791 = scalar_lea.vmem %s7, 32
    %v792 = vld [vmem:[%s791] sm:$0xff]
    %v793 = vld [vmem:[%s791 + $0x8] sm:$0xff]
    %v794 = vld [vmem:[%s791 + $0x10] sm:$0xff]
    %v795 = vld [vmem:[%s791 + $0x18] sm:$0xff]
    %s796 = scalar_lea.vmem %s8, 1
    %v797 = vld [vmem:[%s796] sm:$0x1]
    %v799 = vlaneseq
    %v800 = vshrl.u32 %v799, 7
    %v801 = vsub.s32 0, %v800
    %v802 = vrot.slane %v797, %v801
    %v805 = vsel %vm459, %v790, 0
    %807 = vmatprep.subr.mxu0 0.0
    %808 = vmatpush1.msra.mxu0 %v792
    %809 = vmatprep.subr.mxu0 0.0
    %810 = vmatpush1.msra.mxu0 %v793
    %811 = vmatprep.subr.mxu0 0.0
    %812 = vmatpush1.msra.mxu0 %v794
    %813 = vmatprep.subr.mxu0 0.0
    %814 = vmatpush1.msra.mxu0 %v795
    %815 = vmatprep.subr.mxu0 0.0
    %816 = vmatpush1.msra.mxu0 0.0
    %817 = vmatprep.subr.mxu0 0.0
    %818 = vmatpush1.msra.mxu0 0.0
    %819 = vmatprep.subr.mxu0 0.0
    %820 = vmatpush1.msra.mxu0 0.0
    %821 = vmatprep.subr.mxu0 0.0
    %822 = vmatpush1.msra.mxu0 0.0
    %823 = vmatprep.subr.mxu0 0.0
    %824 = vmatpush1.msra.mxu0 0.0
    %825 = vmatprep.subr.mxu0 0.0
    %826 = vmatpush1.msra.mxu0 0.0
    %827 = vmatprep.subr.mxu0 0.0
    %828 = vmatpush1.msra.mxu0 0.0
    %829 = vmatprep.subr.mxu0 0.0
    %830 = vmatpush1.msra.mxu0 0.0
    %831 = vmatprep.subr.mxu0 0.0
    %832 = vmatpush1.msra.mxu0 0.0
    %833 = vmatprep.subr.mxu0 0.0
    %834 = vmatpush1.msra.mxu0 0.0
    %835 = vmatprep.subr.mxu0 0.0
    %836 = vmatpush1.msra.mxu0 0.0
    %837 = vmatprep.subr.mxu0 0.0
    %838 = vmatpush1.msra.mxu0 0.0
    %839 = vmatprep.subr.mxu0 0.0
    %840 = vmatpush1.msra.mxu0 0.0
    %841 = vmatprep.subr.mxu0 0.0
    %842 = vmatpush1.msra.mxu0 0.0
    %843 = vmatprep.subr.mxu0 0.0
    %844 = vmatpush1.msra.mxu0 0.0
    %845 = vmatprep.subr.mxu0 0.0
    %846 = vmatpush1.msra.mxu0 0.0
    %847 = vmatprep.subr.mxu0 0.0
    %848 = vmatpush1.msra.mxu0 0.0
    %849 = vmatprep.subr.mxu0 0.0
    %850 = vmatpush1.msra.mxu0 0.0
    %851 = vmatprep.subr.mxu0 0.0
    %852 = vmatpush1.msra.mxu0 0.0
    %853 = vmatprep.subr.mxu0 0.0
    %854 = vmatpush1.msra.mxu0 0.0
    %855 = vmatprep.subr.mxu0 0.0
    %856 = vmatpush1.msra.mxu0 0.0
    %857 = vmatprep.subr.mxu0 0.0
    %858 = vmatpush1.msra.mxu0 0.0
    %859 = vmatprep.subr.mxu0 0.0
    %860 = vmatpush1.msra.mxu0 0.0
    %861 = vmatprep.subr.mxu0 0.0
    %862 = vmatpush1.msra.mxu0 0.0
    %863 = vmatprep.subr.mxu0 0.0
    %864 = vmatpush1.msra.mxu0 0.0
    %865 = vmatprep.subr.mxu0 0.0
    %866 = vmatpush1.msra.mxu0 0.0
    %867 = vmatprep.subr.mxu0 0.0
    %868 = vmatpush1.msra.mxu0 0.0
    %869 = vmatprep.subr.mxu0 0.0
    %870 = vmatpush1.msra.mxu0 0.0
    %871 = vmatprep.mubr.f32.mxu0 0.0
    %872 = vmatmul.mubr.f32.gmra.mrb[0].mxu0 %v805
    %v873 = vpop.f32.mrb[0].mxu0
    %v874 = vadd.f32 %v802, %v873
    %v875 = vpop.f32.mrb[0].mxu0
    %876 = vdwg.mxu0
    %v877 = vtanh.pop %v874
    %v878 = vmul.f32 %v877, 0.01
    %v879 = vmul.f32 %v878, 1.442695
    %v880 = vpow.pop %v879
    %882 = vrot.lane.b32.xlu0 %v880, 8
    %v883 = vpop.permute.xlu0 %882
    %v885 = vmul.f32 %v33, %v883
    %v886 = vadd.f32 %v885, %v874
    %s887 = scalar_lea.vmem %s2, 16
    %v888 = vld [vmem:[%s887] sm:$0xff]
    %890 = vrot.lane.b32.xlu0 %v886, 120
    %v891 = vpop.permute.xlu0 %890
    %v892 = vsel %vm374, %v891, 0
    %894 = vmatprep.subr.mxu0 0.0
    %895 = vmatpush1.msra.mxu0 %v888
    %896 = vmatprep.subr.mxu0 0.0
    %897 = vmatpush1.msra.mxu0 0.0
    %898 = vmatprep.subr.mxu0 0.0
    %899 = vmatpush1.msra.mxu0 0.0
    %900 = vmatprep.subr.mxu0 0.0
    %901 = vmatpush1.msra.mxu0 0.0
    %902 = vmatprep.subr.mxu0 0.0
    %903 = vmatpush1.msra.mxu0 0.0
    %904 = vmatprep.subr.mxu0 0.0
    %905 = vmatpush1.msra.mxu0 0.0
    %906 = vmatprep.subr.mxu0 0.0
    %907 = vmatpush1.msra.mxu0 0.0
    %908 = vmatprep.subr.mxu0 0.0
    %909 = vmatpush1.msra.mxu0 0.0
    %910 = vmatprep.subr.mxu0 0.0
    %911 = vmatpush1.msra.mxu0 0.0
    %912 = vmatprep.subr.mxu0 0.0
    %913 = vmatpush1.msra.mxu0 0.0
    %914 = vmatprep.subr.mxu0 0.0
    %915 = vmatpush1.msra.mxu0 0.0
    %916 = vmatprep.subr.mxu0 0.0
    %917 = vmatpush1.msra.mxu0 0.0
    %918 = vmatprep.subr.mxu0 0.0
    %919 = vmatpush1.msra.mxu0 0.0
    %920 = vmatprep.subr.mxu0 0.0
    %921 = vmatpush1.msra.mxu0 0.0
    %922 = vmatprep.subr.mxu0 0.0
    %923 = vmatpush1.msra.mxu0 0.0
    %924 = vmatprep.subr.mxu0 0.0
    %925 = vmatpush1.msra.mxu0 0.0
    %926 = vmatprep.subr.mxu0 0.0
    %927 = vmatpush1.msra.mxu0 0.0
    %928 = vmatprep.subr.mxu0 0.0
    %929 = vmatpush1.msra.mxu0 0.0
    %930 = vmatprep.subr.mxu0 0.0
    %931 = vmatpush1.msra.mxu0 0.0
    %932 = vmatprep.subr.mxu0 0.0
    %933 = vmatpush1.msra.mxu0 0.0
    %934 = vmatprep.subr.mxu0 0.0
    %935 = vmatpush1.msra.mxu0 0.0
    %936 = vmatprep.subr.mxu0 0.0
    %937 = vmatpush1.msra.mxu0 0.0
    %938 = vmatprep.subr.mxu0 0.0
    %939 = vmatpush1.msra.mxu0 0.0
    %940 = vmatprep.subr.mxu0 0.0
    %941 = vmatpush1.msra.mxu0 0.0
    %942 = vmatprep.subr.mxu0 0.0
    %943 = vmatpush1.msra.mxu0 0.0
    %944 = vmatprep.subr.mxu0 0.0
    %945 = vmatpush1.msra.mxu0 0.0
    %946 = vmatprep.subr.mxu0 0.0
    %947 = vmatpush1.msra.mxu0 0.0
    %948 = vmatprep.subr.mxu0 0.0
    %949 = vmatpush1.msra.mxu0 0.0
    %950 = vmatprep.subr.mxu0 0.0
    %951 = vmatpush1.msra.mxu0 0.0
    %952 = vmatprep.subr.mxu0 0.0
    %953 = vmatpush1.msra.mxu0 0.0
    %954 = vmatprep.subr.mxu0 0.0
    %955 = vmatpush1.msra.mxu0 0.0
    %956 = vmatprep.subr.mxu0 0.0
    %957 = vmatpush1.msra.mxu0 0.0
    %958 = vmatprep.mubr.f32.mxu0 0.0
    %959 = vmatmul.mubr.f32.gmra.mrb[0].mxu0 %v892
    %v960 = vpop.f32.mrb[0].mxu0
    %v961 = vadd.f32 %v284, %v960
    %v962 = vpop.f32.mrb[0].mxu0
    %963 = vdwg.mxu0
    %v964 = vtanh.pop %v961
    %s965 = scalar_lea.vmem %s5, 64
    %v966 = vld [vmem:[%s965] sm:$0xff]
    %v967 = vld [vmem:[%s965 + $0x8] sm:$0xff]
    %v968 = vld [vmem:[%s965 + $0x10] sm:$0xff]
    %v969 = vld [vmem:[%s965 + $0x18] sm:$0xff]
    %s970 = scalar_lea.vmem %s6, 2
    %v971 = vld [vmem:[%s970] sm:$0x1]
    %v973 = vlaneseq
    %v974 = vshrl.u32 %v973, 7
    %v975 = vsub.s32 0, %v974
    %v976 = vrot.slane %v971, %v975
    %v979 = vsel %vm459, %v964, 0
    %981 = vmatprep.subr.mxu0 0.0
    %982 = vmatpush1.msra.mxu0 %v966
    %983 = vmatprep.subr.mxu0 0.0
    %984 = vmatpush1.msra.mxu0 %v967
    %985 = vmatprep.subr.mxu0 0.0
    %986 = vmatpush1.msra.mxu0 %v968
    %987 = vmatprep.subr.mxu0 0.0
    %988 = vmatpush1.msra.mxu0 %v969
    %989 = vmatprep.subr.mxu0 0.0
    %990 = vmatpush1.msra.mxu0 0.0
    %991 = vmatprep.subr.mxu0 0.0
    %992 = vmatpush1.msra.mxu0 0.0
    %993 = vmatprep.subr.mxu0 0.0
    %994 = vmatpush1.msra.mxu0 0.0
    %995 = vmatprep.subr.mxu0 0.0
    %996 = vmatpush1.msra.mxu0 0.0
    %997 = vmatprep.subr.mxu0 0.0
    %998 = vmatpush1.msra.mxu0 0.0
    %999 = vmatprep.subr.mxu0 0.0
    %1000 = vmatpush1.msra.mxu0 0.0
    %1001 = vmatprep.subr.mxu0 0.0
    %1002 = vmatpush1.msra.mxu0 0.0
    %1003 = vmatprep.subr.mxu0 0.0
    %1004 = vmatpush1.msra.mxu0 0.0
    %1005 = vmatprep.subr.mxu0 0.0
    %1006 = vmatpush1.msra.mxu0 0.0
    %1007 = vmatprep.subr.mxu0 0.0
    %1008 = vmatpush1.msra.mxu0 0.0
    %1009 = vmatprep.subr.mxu0 0.0
    %1010 = vmatpush1.msra.mxu0 0.0
    %1011 = vmatprep.subr.mxu0 0.0
    %1012 = vmatpush1.msra.mxu0 0.0
    %1013 = vmatprep.subr.mxu0 0.0
    %1014 = vmatpush1.msra.mxu0 0.0
    %1015 = vmatprep.subr.mxu0 0.0
    %1016 = vmatpush1.msra.mxu0 0.0
    %1017 = vmatprep.subr.mxu0 0.0
    %1018 = vmatpush1.msra.mxu0 0.0
    %1019 = vmatprep.subr.mxu0 0.0
    %1020 = vmatpush1.msra.mxu0 0.0
    %1021 = vmatprep.subr.mxu0 0.0
    %1022 = vmatpush1.msra.mxu0 0.0
    %1023 = vmatprep.subr.mxu0 0.0
    %1024 = vmatpush1.msra.mxu0 0.0
    %1025 = vmatprep.subr.mxu0 0.0
    %1026 = vmatpush1.msra.mxu0 0.0
    %1027 = vmatprep.subr.mxu0 0.0
    %1028 = vmatpush1.msra.mxu0 0.0
    %1029 = vmatprep.subr.mxu0 0.0
    %1030 = vmatpush1.msra.mxu0 0.0
    %1031 = vmatprep.subr.mxu0 0.0
    %1032 = vmatpush1.msra.mxu0 0.0
    %1033 = vmatprep.subr.mxu0 0.0
    %1034 = vmatpush1.msra.mxu0 0.0
    %1035 = vmatprep.subr.mxu0 0.0
    %1036 = vmatpush1.msra.mxu0 0.0
    %1037 = vmatprep.subr.mxu0 0.0
    %1038 = vmatpush1.msra.mxu0 0.0
    %1039 = vmatprep.subr.mxu0 0.0
    %1040 = vmatpush1.msra.mxu0 0.0
    %1041 = vmatprep.subr.mxu0 0.0
    %1042 = vmatpush1.msra.mxu0 0.0
    %1043 = vmatprep.subr.mxu0 0.0
    %1044 = vmatpush1.msra.mxu0 0.0
    %1045 = vmatprep.mubr.f32.mxu0 0.0
    %1046 = vmatmul.mubr.f32.gmra.mrb[0].mxu0 %v979
    %v1047 = vpop.f32.mrb[0].mxu0
    %v1048 = vadd.f32 %v976, %v1047
    %v1049 = vpop.f32.mrb[0].mxu0
    %1050 = vdwg.mxu0
    %v1051 = vtanh.pop %v1048
    %s1052 = scalar_lea.vmem %s7, 64
    %v1053 = vld [vmem:[%s1052] sm:$0xff]
    %v1054 = vld [vmem:[%s1052 + $0x8] sm:$0xff]
    %v1055 = vld [vmem:[%s1052 + $0x10] sm:$0xff]
    %v1056 = vld [vmem:[%s1052 + $0x18] sm:$0xff]
    %s1057 = scalar_lea.vmem %s8, 2
    %v1058 = vld [vmem:[%s1057] sm:$0x1]
    %v1060 = vlaneseq
    %v1061 = vshrl.u32 %v1060, 7
    %v1062 = vsub.s32 0, %v1061
    %v1063 = vrot.slane %v1058, %v1062
    %v1066 = vsel %vm459, %v1051, 0
    %1068 = vmatprep.subr.mxu0 0.0
    %1069 = vmatpush1.msra.mxu0 %v1053
    %1070 = vmatprep.subr.mxu0 0.0
    %1071 = vmatpush1.msra.mxu0 %v1054
    %1072 = vmatprep.subr.mxu0 0.0
    %1073 = vmatpush1.msra.mxu0 %v1055
    %1074 = vmatprep.subr.mxu0 0.0
    %1075 = vmatpush1.msra.mxu0 %v1056
    %1076 = vmatprep.subr.mxu0 0.0
    %1077 = vmatpush1.msra.mxu0 0.0
    %1078 = vmatprep.subr.mxu0 0.0
    %1079 = vmatpush1.msra.mxu0 0.0
    %1080 = vmatprep.subr.mxu0 0.0
    %1081 = vmatpush1.msra.mxu0 0.0
    %1082 = vmatprep.subr.mxu0 0.0
    %1083 = vmatpush1.msra.mxu0 0.0
    %1084 = vmatprep.subr.mxu0 0.0
    %1085 = vmatpush1.msra.mxu0 0.0
    %1086 = vmatprep.subr.mxu0 0.0
    %1087 = vmatpush1.msra.mxu0 0.0
    %1088 = vmatprep.subr.mxu0 0.0
    %1089 = vmatpush1.msra.mxu0 0.0
    %1090 = vmatprep.subr.mxu0 0.0
    %1091 = vmatpush1.msra.mxu0 0.0
    %1092 = vmatprep.subr.mxu0 0.0
    %1093 = vmatpush1.msra.mxu0 0.0
    %1094 = vmatprep.subr.mxu0 0.0
    %1095 = vmatpush1.msra.mxu0 0.0
    %1096 = vmatprep.subr.mxu0 0.0
    %1097 = vmatpush1.msra.mxu0 0.0
    %1098 = vmatprep.subr.mxu0 0.0
    %1099 = vmatpush1.msra.mxu0 0.0
    %1100 = vmatprep.subr.mxu0 0.0
    %1101 = vmatpush1.msra.mxu0 0.0
    %1102 = vmatprep.subr.mxu0 0.0
    %1103 = vmatpush1.msra.mxu0 0.0
    %1104 = vmatprep.subr.mxu0 0.0
    %1105 = vmatpush1.msra.mxu0 0.0
    %1106 = vmatprep.subr.mxu0 0.0
    %1107 = vmatpush1.msra.mxu0 0.0
    %1108 = vmatprep.subr.mxu0 0.0
    %1109 = vmatpush1.msra.mxu0 0.0
    %1110 = vmatprep.subr.mxu0 0.0
    %1111 = vmatpush1.msra.mxu0 0.0
    %1112 = vmatprep.subr.mxu0 0.0
    %1113 = vmatpush1.msra.mxu0 0.0
    %1114 = vmatprep.subr.mxu0 0.0
    %1115 = vmatpush1.msra.mxu0 0.0
    %1116 = vmatprep.subr.mxu0 0.0
    %1117 = vmatpush1.msra.mxu0 0.0
    %1118 = vmatprep.subr.mxu0 0.0
    %1119 = vmatpush1.msra.mxu0 0.0
    %1120 = vmatprep.subr.mxu0 0.0
    %1121 = vmatpush1.msra.mxu0 0.0
    %1122 = vmatprep.subr.mxu0 0.0
    %1123 = vmatpush1.msra.mxu0 0.0
    %1124 = vmatprep.subr.mxu0 0.0
    %1125 = vmatpush1.msra.mxu0 0.0
    %1126 = vmatprep.subr.mxu0 0.0
    %1127 = vmatpush1.msra.mxu0 0.0
    %1128 = vmatprep.subr.mxu0 0.0
    %1129 = vmatpush1.msra.mxu0 0.0
    %1130 = vmatprep.subr.mxu0 0.0
    %1131 = vmatpush1.msra.mxu0 0.0
    %1132 = vmatprep.mubr.f32.mxu0 0.0
    %1133 = vmatmul.mubr.f32.gmra.mrb[0].mxu0 %v1066
    %v1134 = vpop.f32.mrb[0].mxu0
    %v1135 = vadd.f32 %v1063, %v1134
    %v1136 = vpop.f32.mrb[0].mxu0
    %1137 = vdwg.mxu0
    %v1138 = vtanh.pop %v1135
    %v1139 = vmul.f32 %v1138, 0.01
    %v1140 = vmul.f32 %v1139, 1.442695
    %v1141 = vpow.pop %v1140
    %v1142 = vmul.f32 %v627, %v1141
    %1144 = vrot.lane.b32.xlu0 %v1135, 120
    %v1145 = vpop.permute.xlu0 %1144
    %v1147 = vadd.f32 %v1142, %v1145
    %s1148 = scalar_lea.vmem %s2, 24
    %v1149 = vld [vmem:[%s1148] sm:$0xff]
    %v1151 = vsel %vm374, %v1147, 0
    %1153 = vmatprep.subr.mxu0 0.0
    %1154 = vmatpush1.msra.mxu0 %v1149
    %1155 = vmatprep.subr.mxu0 0.0
    %1156 = vmatpush1.msra.mxu0 0.0
    %1157 = vmatprep.subr.mxu0 0.0
    %1158 = vmatpush1.msra.mxu0 0.0
    %1159 = vmatprep.subr.mxu0 0.0
    %1160 = vmatpush1.msra.mxu0 0.0
    %1161 = vmatprep.subr.mxu0 0.0
    %1162 = vmatpush1.msra.mxu0 0.0
    %1163 = vmatprep.subr.mxu0 0.0
    %1164 = vmatpush1.msra.mxu0 0.0
    %1165 = vmatprep.subr.mxu0 0.0
    %1166 = vmatpush1.msra.mxu0 0.0
    %1167 = vmatprep.subr.mxu0 0.0
    %1168 = vmatpush1.msra.mxu0 0.0
    %1169 = vmatprep.subr.mxu0 0.0
    %1170 = vmatpush1.msra.mxu0 0.0
    %1171 = vmatprep.subr.mxu0 0.0
    %1172 = vmatpush1.msra.mxu0 0.0
    %1173 = vmatprep.subr.mxu0 0.0
    %1174 = vmatpush1.msra.mxu0 0.0
    %1175 = vmatprep.subr.mxu0 0.0
    %1176 = vmatpush1.msra.mxu0 0.0
    %1177 = vmatprep.subr.mxu0 0.0
    %1178 = vmatpush1.msra.mxu0 0.0
    %1179 = vmatprep.subr.mxu0 0.0
    %1180 = vmatpush1.msra.mxu0 0.0
    %1181 = vmatprep.subr.mxu0 0.0
    %1182 = vmatpush1.msra.mxu0 0.0
    %1183 = vmatprep.subr.mxu0 0.0
    %1184 = vmatpush1.msra.mxu0 0.0
    %1185 = vmatprep.subr.mxu0 0.0
    %1186 = vmatpush1.msra.mxu0 0.0
    %1187 = vmatprep.subr.mxu0 0.0
    %1188 = vmatpush1.msra.mxu0 0.0
    %1189 = vmatprep.subr.mxu0 0.0
    %1190 = vmatpush1.msra.mxu0 0.0
    %1191 = vmatprep.subr.mxu0 0.0
    %1192 = vmatpush1.msra.mxu0 0.0
    %1193 = vmatprep.subr.mxu0 0.0
    %1194 = vmatpush1.msra.mxu0 0.0
    %1195 = vmatprep.subr.mxu0 0.0
    %1196 = vmatpush1.msra.mxu0 0.0
    %1197 = vmatprep.subr.mxu0 0.0
    %1198 = vmatpush1.msra.mxu0 0.0
    %1199 = vmatprep.subr.mxu0 0.0
    %1200 = vmatpush1.msra.mxu0 0.0
    %1201 = vmatprep.subr.mxu0 0.0
    %1202 = vmatpush1.msra.mxu0 0.0
    %1203 = vmatprep.subr.mxu0 0.0
    %1204 = vmatpush1.msra.mxu0 0.0
    %1205 = vmatprep.subr.mxu0 0.0
    %1206 = vmatpush1.msra.mxu0 0.0
    %1207 = vmatprep.subr.mxu0 0.0
    %1208 = vmatpush1.msra.mxu0 0.0
    %1209 = vmatprep.subr.mxu0 0.0
    %1210 = vmatpush1.msra.mxu0 0.0
    %1211 = vmatprep.subr.mxu0 0.0
    %1212 = vmatpush1.msra.mxu0 0.0
    %1213 = vmatprep.subr.mxu0 0.0
    %1214 = vmatpush1.msra.mxu0 0.0
    %1215 = vmatprep.subr.mxu0 0.0
    %1216 = vmatpush1.msra.mxu0 0.0
    %1217 = vmatprep.mubr.f32.mxu0 0.0
    %1218 = vmatmul.mubr.f32.gmra.mrb[0].mxu0 %v1151
    %v1219 = vpop.f32.mrb[0].mxu0
    %v1220 = vadd.f32 %v367, %v1219
    %v1221 = vpop.f32.mrb[0].mxu0
    %1222 = vdwg.mxu0
    %v1223 = vtanh.pop %v1220
    %s1224 = scalar_lea.vmem %s5, 96
    %v1225 = vld [vmem:[%s1224] sm:$0xff]
    %v1226 = vld [vmem:[%s1224 + $0x8] sm:$0xff]
    %v1227 = vld [vmem:[%s1224 + $0x10] sm:$0xff]
    %v1228 = vld [vmem:[%s1224 + $0x18] sm:$0xff]
    %s1229 = scalar_lea.vmem %s6, 3
    %v1230 = vld [vmem:[%s1229] sm:$0x1]
    %v1232 = vlaneseq
    %v1233 = vshrl.u32 %v1232, 7
    %v1234 = vsub.s32 0, %v1233
    %v1235 = vrot.slane %v1230, %v1234
    %v1238 = vsel %vm459, %v1223, 0
    %1240 = vmatprep.subr.mxu0 0.0
    %1241 = vmatpush1.msra.mxu0 %v1225
    %1242 = vmatprep.subr.mxu0 0.0
    %1243 = vmatpush1.msra.mxu0 %v1226
    %1244 = vmatprep.subr.mxu0 0.0
    %1245 = vmatpush1.msra.mxu0 %v1227
    %1246 = vmatprep.subr.mxu0 0.0
    %1247 = vmatpush1.msra.mxu0 %v1228
    %1248 = vmatprep.subr.mxu0 0.0
    %1249 = vmatpush1.msra.mxu0 0.0
    %1250 = vmatprep.subr.mxu0 0.0
    %1251 = vmatpush1.msra.mxu0 0.0
    %1252 = vmatprep.subr.mxu0 0.0
    %1253 = vmatpush1.msra.mxu0 0.0
    %1254 = vmatprep.subr.mxu0 0.0
    %1255 = vmatpush1.msra.mxu0 0.0
    %1256 = vmatprep.subr.mxu0 0.0
    %1257 = vmatpush1.msra.mxu0 0.0
    %1258 = vmatprep.subr.mxu0 0.0
    %1259 = vmatpush1.msra.mxu0 0.0
    %1260 = vmatprep.subr.mxu0 0.0
    %1261 = vmatpush1.msra.mxu0 0.0
    %1262 = vmatprep.subr.mxu0 0.0
    %1263 = vmatpush1.msra.mxu0 0.0
    %1264 = vmatprep.subr.mxu0 0.0
    %1265 = vmatpush1.msra.mxu0 0.0
    %1266 = vmatprep.subr.mxu0 0.0
    %1267 = vmatpush1.msra.mxu0 0.0
    %1268 = vmatprep.subr.mxu0 0.0
    %1269 = vmatpush1.msra.mxu0 0.0
    %1270 = vmatprep.subr.mxu0 0.0
    %1271 = vmatpush1.msra.mxu0 0.0
    %1272 = vmatprep.subr.mxu0 0.0
    %1273 = vmatpush1.msra.mxu0 0.0
    %1274 = vmatprep.subr.mxu0 0.0
    %1275 = vmatpush1.msra.mxu0 0.0
    %1276 = vmatprep.subr.mxu0 0.0
    %1277 = vmatpush1.msra.mxu0 0.0
    %1278 = vmatprep.subr.mxu0 0.0
    %1279 = vmatpush1.msra.mxu0 0.0
    %1280 = vmatprep.subr.mxu0 0.0
    %1281 = vmatpush1.msra.mxu0 0.0
    %1282 = vmatprep.subr.mxu0 0.0
    %1283 = vmatpush1.msra.mxu0 0.0
    %1284 = vmatprep.subr.mxu0 0.0
    %1285 = vmatpush1.msra.mxu0 0.0
    %1286 = vmatprep.subr.mxu0 0.0
    %1287 = vmatpush1.msra.mxu0 0.0
    %1288 = vmatprep.subr.mxu0 0.0
    %1289 = vmatpush1.msra.mxu0 0.0
    %1290 = vmatprep.subr.mxu0 0.0
    %1291 = vmatpush1.msra.mxu0 0.0
    %1292 = vmatprep.subr.mxu0 0.0
    %1293 = vmatpush1.msra.mxu0 0.0
    %1294 = vmatprep.subr.mxu0 0.0
    %1295 = vmatpush1.msra.mxu0 0.0
    %1296 = vmatprep.subr.mxu0 0.0
    %1297 = vmatpush1.msra.mxu0 0.0
    %1298 = vmatprep.subr.mxu0 0.0
    %1299 = vmatpush1.msra.mxu0 0.0
    %1300 = vmatprep.subr.mxu0 0.0
    %1301 = vmatpush1.msra.mxu0 0.0
    %1302 = vmatprep.subr.mxu0 0.0
    %1303 = vmatpush1.msra.mxu0 0.0
    %1304 = vmatprep.mubr.f32.mxu0 0.0
    %1305 = vmatmul.mubr.f32.gmra.mrb[0].mxu0 %v1238
    %v1306 = vpop.f32.mrb[0].mxu0
    %v1307 = vadd.f32 %v1235, %v1306
    %v1308 = vpop.f32.mrb[0].mxu0
    %1309 = vdwg.mxu0
    %v1310 = vtanh.pop %v1307
    %s1311 = scalar_lea.vmem %s7, 96
    %v1312 = vld [vmem:[%s1311] sm:$0xff]
    %v1313 = vld [vmem:[%s1311 + $0x8] sm:$0xff]
    %v1314 = vld [vmem:[%s1311 + $0x10] sm:$0xff]
    %v1315 = vld [vmem:[%s1311 + $0x18] sm:$0xff]
    %s1316 = scalar_lea.vmem %s8, 3
    %v1317 = vld [vmem:[%s1316] sm:$0x1]
    %v1319 = vlaneseq
    %v1320 = vshrl.u32 %v1319, 7
    %v1321 = vsub.s32 0, %v1320
    %v1322 = vrot.slane %v1317, %v1321
    %v1325 = vsel %vm459, %v1310, 0
    %1327 = vmatprep.subr.mxu0 0.0
    %1328 = vmatpush1.msra.mxu0 %v1312
    %1329 = vmatprep.subr.mxu0 0.0
    %1330 = vmatpush1.msra.mxu0 %v1313
    %1331 = vmatprep.subr.mxu0 0.0
    %1332 = vmatpush1.msra.mxu0 %v1314
    %1333 = vmatprep.subr.mxu0 0.0
    %1334 = vmatpush1.msra.mxu0 %v1315
    %1335 = vmatprep.subr.mxu0 0.0
    %1336 = vmatpush1.msra.mxu0 0.0
    %1337 = vmatprep.subr.mxu0 0.0
    %1338 = vmatpush1.msra.mxu0 0.0
    %1339 = vmatprep.subr.mxu0 0.0
    %1340 = vmatpush1.msra.mxu0 0.0
    %1341 = vmatprep.subr.mxu0 0.0
    %1342 = vmatpush1.msra.mxu0 0.0
    %1343 = vmatprep.subr.mxu0 0.0
    %1344 = vmatpush1.msra.mxu0 0.0
    %1345 = vmatprep.subr.mxu0 0.0
    %1346 = vmatpush1.msra.mxu0 0.0
    %1347 = vmatprep.subr.mxu0 0.0
    %1348 = vmatpush1.msra.mxu0 0.0
    %1349 = vmatprep.subr.mxu0 0.0
    %1350 = vmatpush1.msra.mxu0 0.0
    %1351 = vmatprep.subr.mxu0 0.0
    %1352 = vmatpush1.msra.mxu0 0.0
    %1353 = vmatprep.subr.mxu0 0.0
    %1354 = vmatpush1.msra.mxu0 0.0
    %1355 = vmatprep.subr.mxu0 0.0
    %1356 = vmatpush1.msra.mxu0 0.0
    %1357 = vmatprep.subr.mxu0 0.0
    %1358 = vmatpush1.msra.mxu0 0.0
    %1359 = vmatprep.subr.mxu0 0.0
    %1360 = vmatpush1.msra.mxu0 0.0
    %1361 = vmatprep.subr.mxu0 0.0
    %1362 = vmatpush1.msra.mxu0 0.0
    %1363 = vmatprep.subr.mxu0 0.0
    %1364 = vmatpush1.msra.mxu0 0.0
    %1365 = vmatprep.subr.mxu0 0.0
    %1366 = vmatpush1.msra.mxu0 0.0
    %1367 = vmatprep.subr.mxu0 0.0
    %1368 = vmatpush1.msra.mxu0 0.0
    %1369 = vmatprep.subr.mxu0 0.0
    %1370 = vmatpush1.msra.mxu0 0.0
    %1371 = vmatprep.subr.mxu0 0.0
    %1372 = vmatpush1.msra.mxu0 0.0
    %1373 = vmatprep.subr.mxu0 0.0
    %1374 = vmatpush1.msra.mxu0 0.0
    %1375 = vmatprep.subr.mxu0 0.0
    %1376 = vmatpush1.msra.mxu0 0.0
    %1377 = vmatprep.subr.mxu0 0.0
    %1378 = vmatpush1.msra.mxu0 0.0
    %1379 = vmatprep.subr.mxu0 0.0
    %1380 = vmatpush1.msra.mxu0 0.0
    %1381 = vmatprep.subr.mxu0 0.0
    %1382 = vmatpush1.msra.mxu0 0.0
    %1383 = vmatprep.subr.mxu0 0.0
    %1384 = vmatpush1.msra.mxu0 0.0
    %1385 = vmatprep.subr.mxu0 0.0
    %1386 = vmatpush1.msra.mxu0 0.0
    %1387 = vmatprep.subr.mxu0 0.0
    %1388 = vmatpush1.msra.mxu0 0.0
    %1389 = vmatprep.subr.mxu0 0.0
    %1390 = vmatpush1.msra.mxu0 0.0
    %1391 = vmatprep.mubr.f32.mxu0 0.0
    %1392 = vmatmul.mubr.f32.gmra.mrb[0].mxu0 %v1325
    %v1393 = vpop.f32.mrb[0].mxu0
    %v1394 = vadd.f32 %v1322, %v1393
    %v1395 = vpop.f32.mrb[0].mxu0
    %1396 = vdwg.mxu0
    %v1397 = vtanh.pop %v1394
    %v1398 = vmul.f32 %v1397, 0.01
    %v1399 = vmul.f32 %v1398, 1.442695
    %v1400 = vpow.pop %v1399
    %1402 = vrot.lane.b32.xlu0 %v1400, 8
    %v1403 = vpop.permute.xlu0 %1402
    %v1405 = vmul.f32 %v886, %v1403
    %v1406 = vadd.f32 %v1405, %v1394
    %1407 = vst.msk [vmem:[#allocation2] sm:$0xff] %vm374, %v1147
    %vm1408 = vcmask 130112
    %1409 = vst.msk [vmem:[#allocation2] sm:$0xff] %vm1408, %v1406
    // Predicated region
    $region38: #{inn_forward.1} parent=1 // pred_check
      _
    $region39: #{inn_forward.1} parent=1 // pred_check_branch
      %1411 = sbr.rel (0) target = $region41
    $region40: #{inn_forward.1} parent=1 // pred_region
      %s1413 = ssub.s32 128, 128
      %1414 = vsyncadd [#allocation3], %s1413
      %s1416 = sshll.u32 [#allocation2], 4
      %s1417 = int_to_ptr.vmem [resolvable:$true] %s1416
      %1419 = dma.vmem_to_hbm [thread:$0]  %s1417, 128, %s9, [#allocation3]
    $region41: #{inn_forward.1} parent=1 // pred_fallthru
      _
    // Predicated region
    $region42: #{inn_forward.1} parent=1 // pred_check
      _
    $region43: #{inn_forward.1} parent=1 // pred_check_branch
      %1421 = sbr.rel (0) target = $region45
    $region44: #{inn_forward.1} parent=1 // pred_region
      %1422 = dma.done [#allocation3], 128
    $region45: #{inn_forward.1} parent=1 // pred_fallthru
      _
    %1423 = vsyncpa [#allocation3], 1

</llo_original>
